<compile_context>
chip_gen: v7x
topology: tpu7x:2x2x1
jax: 0.10.0
libtpu: 0.0.40
codegen_flags: <defaults>
</compile_context>

<pallas_src>
import jax
import jax.numpy as jnp
import numpy as np
from jax.experimental import pallas as pl
from jax.experimental.pallas import tpu as pltpu

EMBED_DIM = 42      # include_input (2) + 2 dims * 2 fns * 10 freqs (40)
K_PAD = 128         # pts feature dim zero-padded to a full lane width
HIDDEN = 256        # W in the torch module
OUT_DIM = 6         # 3 + 3
LANE = 128          # lane-dense (padded) output width
N_FREQS = 10
NEG_SLOPE = 0.01    # F.leaky_relu default


def _leaky(h):
    return jnp.where(h > 0, h, NEG_SLOPE * h)


# ----------------------------------------------------------------------------
# Positional encoding (glue / reference version) — matches torch Embedder
# with multires=10, in_dims=2: [x, sin(x*f0), cos(x*f0), sin(x*f1), ...].
# ----------------------------------------------------------------------------
def embed(x2):
    freqs = 2.0 ** jnp.arange(N_FREQS, dtype=jnp.float32)               # (10,)
    xb = x2[:, None, :] * freqs[None, :, None]                          # (M, 10, 2)
    sc = jnp.stack([jnp.sin(xb), jnp.cos(xb)], axis=2)                  # (M, 10, 2, 2)
    return jnp.concatenate([x2, sc.reshape(x2.shape[0], -1)], axis=-1)  # (M, 42)


def _embed_padded_bf16(x2, m_pad):
    """Fallback glue: embed + row/feature pad + bf16 cast in one expression."""
    m = x2.shape[0]
    pts = embed(x2)
    pts = jnp.pad(pts, ((0, m_pad - m), (0, K_PAD - EMBED_DIM)))
    return pts.astype(jnp.bfloat16)


# ----------------------------------------------------------------------------
# Constant rows driving the in-kernel positional encoding.
# Column c of the 42-wide embedding:
#   c=0: x0, c=1: x1; c>=2: j=(c-2)//4 freq index, r=(c-2)%4 in
#   {sin x0, sin x1, cos x0, cos x1}; cos is computed as sin(arg + pi/2).
# Rows: 0=freq, 1=phase, 2=select-x0, 3=passthrough-x0, 4=passthrough-x1,
#       5=pe-mask (cols 2..41), 6..7 unused (pads to an 8-sublane block).
# ----------------------------------------------------------------------------
def _build_embed_consts():
    c = np.zeros((8, LANE), np.float32)
    for col in range(2, EMBED_DIM):
        idx = col - 2
        j, r = divmod(idx, 4)
        c[0, col] = 2.0 ** j
        c[1, col] = np.pi / 2.0 if r >= 2 else 0.0
        c[2, col] = 1.0 if (r % 2 == 0) else 0.0
        c[5, col] = 1.0
    c[3, 0] = 1.0
    c[4, 1] = 1.0
    return c


_EMBED_CONSTS = _build_embed_consts()


# ----------------------------------------------------------------------------
# Kernels
# ----------------------------------------------------------------------------
def _mlp_body(pts, w01_ref, b0_ref, w1h_ref, b1_ref, w2_ref, b2_ref,
              wo_ref, bo_ref):
    """MLP on a (TM, 128) bf16 pts tile; returns (TM, 128) f32 padded output."""
    bf16 = jnp.bfloat16
    f32 = jnp.float32

    # fused layer-0 + skip-partial: pts @ [W0 | W1[:42]] -> (TM, 512) f32
    h01 = jnp.dot(pts, w01_ref[...], preferred_element_type=f32)
    h = _leaky(h01[:, :HIDDEN] + b0_ref[...])
    skip = h01[:, HIDDEN:]

    # skip layer: cat([pts, h]) @ W1 == pts@W1[:42] + h@W1[42:]
    h = _leaky(skip
               + jnp.dot(h.astype(bf16), w1h_ref[...], preferred_element_type=f32)
               + b1_ref[...])

    # layer 2
    h = _leaky(jnp.dot(h.astype(bf16), w2_ref[...], preferred_element_type=f32)
               + b2_ref[...])

    # output layer (N padded 6 -> 128; intentionally NOT padded to 256)
    return jnp.dot(h.astype(bf16), wo_ref[...], preferred_element_type=f32) + bo_ref[...]


def _mlp_kernel(pts_ref, w01_ref, b0_ref, w1h_ref, b1_ref, w2_ref, b2_ref,
                wo_ref, bo_ref, out_ref):
    """Fallback kernel: pre-embedded (TM, 128) bf16 pts tile in, bf16 out."""
    out_ref[...] = _mlp_body(pts_ref[...], w01_ref, b0_ref, w1h_ref, b1_ref,
                             w2_ref, b2_ref, wo_ref, bo_ref).astype(out_ref.dtype)


def _embed_mlp_kernel(x_ref, cst_ref, w01_ref, b0_ref, w1h_ref, b1_ref,
                      w2_ref, b2_ref, wo_ref, bo_ref, out_ref):
    """Main kernel: raw (TM, 2) f32 coords in, positional encoding on-chip."""
    x = x_ref[...]                                # (TM, 2) f32
    x0 = x[:, 0:1]                                # (TM, 1)
    x1 = x[:, 1:2]
    cst = cst_ref[...]                            # (8, 128) f32
    freq, phase, sel = cst[0:1], cst[1:2], cst[2:3]
    p0, p1, pem = cst[3:4], cst[4:5], cst[5:6]

    xsel = x0 * sel + x1 * (1.0 - sel)            # (TM, 128)
    pe = jnp.sin(xsel * freq + phase)             # cos(x) == sin(x + pi/2)
    pts = x0 * p0 + x1 * p1 + pe * pem            # (TM, 128) f32, cols>=42 are 0

    out_ref[...] = _mlp_body(pts.astype(jnp.bfloat16), w01_ref, b0_ref, w1h_ref,
                             b1_ref, w2_ref, b2_ref, wo_ref, bo_ref
                             ).astype(out_ref.dtype)


# ----------------------------------------------------------------------------
# One-time probe: does Mosaic accept jnp.sin (and the narrow-input broadcast
# pattern) inside a Pallas kernel?  If not, fall back to the glue embed.
# ----------------------------------------------------------------------------
_USE_INKERNEL_EMBED = None


def _probe_inkernel_embed():
    def k(x_ref, c_ref, o_ref):
        x = x_ref[...]
        x0 = x[:, 0:1]
        x1 = x[:, 1:2]
        c = c_ref[...]
        xsel = x0 * c[2:3] + x1 * (1.0 - c[2:3])
        o_ref[...] = x0 * c[3:4] + x1 * c[4:5] + jnp.sin(xsel * c[0:1] + c[1:2]) * c[5:6]

    try:
        f = pl.pallas_call(k, out_shape=jax.ShapeDtypeStruct((16, LANE), jnp.float32))
        jax.jit(f).lower(jax.ShapeDtypeStruct((16, 2), jnp.float32),
                         jax.ShapeDtypeStruct((8, LANE), jnp.float32)).compile()
        return True
    except Exception:
        return False


def _use_inkernel_embed():
    global _USE_INKERNEL_EMBED
    if _USE_INKERNEL_EMBED is None:
        _USE_INKERNEL_EMBED = _probe_inkernel_embed()
    return _USE_INKERNEL_EMBED


# ----------------------------------------------------------------------------
# Tiling helpers
# ----------------------------------------------------------------------------
def _round_up(a, b):
    return -(-a // b) * b


def _has_two_tensorcores():
    try:
        d = jax.devices()[0]
        if getattr(d, "platform", "") != "tpu":
            return False
        kind = str(getattr(d, "device_kind", "")).lower()
        return ("v7" in kind) or ("tpu7" in kind)
    except Exception:
        return False


def _choose_tm(m, tm, two_cores):
    tm = max(16, _round_up(tm, 16))               # bf16 sublane packing
    tm = min(tm, 4096)                            # keep VMEM small on every gen
    m16 = _round_up(max(m, 1), 16)
    t = min(tm, m16)
    if two_cores and m16 >= 4 * 256 and t > 256:
        # v7x only: keep >= 4 grid steps so both TensorCores + pipeline stay busy
        t = min(t, max(256, _round_up(pl.cdiv(m16, 4), 256)))
    return t


# ----------------------------------------------------------------------------
# Parameter packing (hoisted: call ONCE, outside the jitted forward)
# ----------------------------------------------------------------------------
def pack_params(params):
    """torch-layout params -> kernel-ready (bf16, fused/padded) params."""
    w0, b0, w1, b1, w2, b2, wo, bo = params
    bf16 = jnp.bfloat16
    w1p, w1h = w1[:EMBED_DIM], w1[EMBED_DIM:]
    w01 = jnp.concatenate([w0, w1p], axis=1)                      # (42, 512)
    w01 = jnp.pad(w01, ((0, K_PAD - EMBED_DIM), (0, 0)))          # (128, 512)
    wo_p = jnp.pad(wo, ((0, 0), (0, LANE - OUT_DIM)))             # (256, 128)
    bo_p = jnp.pad(bo.reshape(1, -1), ((0, 0), (0, LANE - OUT_DIM)))
    return (w01.astype(bf16), b0.reshape(1, -1).astype(jnp.float32),
            w1h.astype(bf16), b1.reshape(1, -1).astype(jnp.float32),
            w2.astype(bf16), b2.reshape(1, -1).astype(jnp.float32),
            wo_p.astype(bf16), bo_p.astype(jnp.float32))


# ----------------------------------------------------------------------------
# Forward
# ----------------------------------------------------------------------------
def pe_grid_forward(x, packed_params, tm=2048):
    """Forward equivalent to PEGrid.forward.  x: (B, N, 2) or (M, 2)."""
    orig_3d = (x.ndim == 3)
    if orig_3d:
        b, n, _ = x.shape
    x2 = x.reshape(-1, 2).astype(jnp.float32)
    m = x2.shape[0]

    tm_eff = _choose_tm(m, tm, _has_two_tensorcores())
    m_pad = pl.cdiv(m, tm_eff) * tm_eff
    grid = (m_pad // tm_eff,)

    full = lambda shape: pl.BlockSpec(shape, lambda i: (0, 0))
    weight_specs = [
        full((K_PAD, 2 * HIDDEN)),                 # [W0 | W1[:42]] padded
        full((1, HIDDEN)),                         # b0
        full((HIDDEN, HIDDEN)),                    # W1[42:]
        full((1, HIDDEN)),                         # b1
        full((HIDDEN, HIDDEN)),                    # W2
        full((1, HIDDEN)),                         # b2
        full((HIDDEN, LANE)),                      # W_out padded
        full((1, LANE)),                           # b_out padded
    ]
    out_spec = pl.BlockSpec((tm_eff, LANE), lambda i: (i, 0))
    out_shape = jax.ShapeDtypeStruct((m_pad, LANE), jnp.bfloat16)

    macs_per_row = K_PAD * 2 * HIDDEN + 2 * HIDDEN * HIDDEN + HIDDEN * LANE
    weight_bytes = (2 * (K_PAD * 2 * HIDDEN + 2 * HIDDEN * HIDDEN + HIDDEN * LANE)
                    + 4 * (3 * HIDDEN + LANE))
    cparams = pltpu.CompilerParams(dimension_semantics=("parallel",))

    if _use_inkernel_embed():
        x2p = x2 if m_pad == m else jnp.pad(x2, ((0, m_pad - m), (0, 0)))
        cst = jnp.asarray(_EMBED_CONSTS)
        cost = pl.CostEstimate(
            flops=2 * m_pad * macs_per_row,
            transcendentals=m_pad * LANE,
            bytes_accessed=m_pad * (2 * 4 + LANE * 2) + weight_bytes + 8 * LANE * 4)
        out = pl.pallas_call(
            _embed_mlp_kernel,
            out_shape=out_shape,
            grid=grid,
            in_specs=[pl.BlockSpec((tm_eff, 2), lambda i: (i, 0)),
                      full((8, LANE))] + weight_specs,
            out_specs=out_spec,
            compiler_params=cparams,
            cost_estimate=cost,
        )(x2p, cst, *packed_params)
    else:
        # Fallback: single-fusion glue embed (embed + pad + bf16 in one pass)
        pts = _embed_padded_bf16(x2, m_pad)
        cost = pl.CostEstimate(
            flops=2 * m_pad * macs_per_row,
            transcendentals=0,
            bytes_accessed=m_pad * (K_PAD * 2 + LANE * 2) + weight_bytes)
        out = pl.pallas_call(
            _mlp_kernel,
            out_shape=out_shape,
            grid=grid,
            in_specs=[pl.BlockSpec((tm_eff, K_PAD), lambda i: (i, 0))] + weight_specs,
            out_specs=out_spec,
            compiler_params=cparams,
            cost_estimate=cost,
        )(pts, *packed_params)

    out = out[:m, :OUT_DIM].astype(jnp.float32)
    if orig_3d:
        return out.reshape(b, n, OUT_DIM)
    return out


# ----------------------------------------------------------------------------
# Synthetic params + pure-JAX reference
# ----------------------------------------------------------------------------
def init_params(key):
    """Deterministic synthetic weights (shapes match the torch module).

    # TODO(synk): torch uses nn.init.orthogonal_; plain scaled normal used here.
    """
    ks = jax.random.split(key, 4)

    def linear(k, din, dout):
        kw, kb = jax.random.split(k)
        w = jax.random.normal(kw, (din, dout), jnp.float32) / jnp.sqrt(jnp.float32(din))
        bias = jax.random.normal(kb, (dout,), jnp.float32) * 0.01
        return w, bias

    w0, b0 = linear(ks[0], EMBED_DIM, HIDDEN)
    w1, b1 = linear(ks[1], EMBED_DIM + HIDDEN, HIDDEN)
    w2, b2 = linear(ks[2], HIDDEN, HIDDEN)
    wo, bo = linear(ks[3], HIDDEN, OUT_DIM)
    return (w0, b0, w1, b1, w2, b2, wo, bo)


def reference(x, params):
    """Pure-JAX f32 re-implementation of PEGrid.forward for validation."""
    orig_3d = (x.ndim == 3)
    if orig_3d:
        b, n, _ = x.shape
    x2 = x.reshape(-1, 2).astype(jnp.float32)
    pts = embed(x2)
    w0, b0, w1, b1, w2, b2, wo, bo = params

    h = _leaky(pts @ w0 + b0)
    h = jnp.concatenate([pts, h], axis=-1)        # skip at i=0
    h = _leaky(h @ w1 + b1)
    h = _leaky(h @ w2 + b2)
    out = h @ wo + bo
    if orig_3d:
        return out.reshape(b, n, OUT_DIM)
    return out


if __name__ == "__main__":
    key = jax.random.PRNGKey(0)
    kx, kp, kx2 = jax.random.split(key, 3)

    params = init_params(kp)
    packed = pack_params(params)          # packed once, outside jit
    _use_inkernel_embed()                 # resolve kernel variant up front

    fwd = jax.jit(pe_grid_forward, static_argnames=("tm",))

    # small shapes: batch=2, N_sample=64 points, 2-D coords -> (2, 64, 2)
    x = jax.random.uniform(kx, (2, 64, 2), jnp.float32, minval=-1.0, maxval=1.0)
    out = jax.block_until_ready(fwd(x, packed))
    ref = reference(x, params)
    assert out.shape == (2, 64, OUT_DIM), out.shape
    np.testing.assert_allclose(np.asarray(out), np.asarray(ref), rtol=2e-2, atol=2e-2)

    # 2-D input with a row count that is not a multiple of the tile (pads rows)
    x2d = jax.random.uniform(kx2, (100, 2), jnp.float32, minval=-1.0, maxval=1.0)
    out2 = jax.block_until_ready(fwd(x2d, packed))
    ref2 = reference(x2d, params)
    assert out2.shape == (100, OUT_DIM), out2.shape
    np.testing.assert_allclose(np.asarray(out2), np.asarray(ref2), rtol=2e-2, atol=2e-2)

    print("KERNEL_OK")
</pallas_src>

<mosaic_0001>
module attributes {stable_mosaic.version = 11 : i64} {
  func.func @_mlp_kernel(%arg0: i32, %arg1: memref<128x128xbf16, #tpu.memory_space<vmem>>, %arg2: memref<128x512xbf16, #tpu.memory_space<vmem>>, %arg3: memref<1x256xf32, #tpu.memory_space<vmem>>, %arg4: memref<256x256xbf16, #tpu.memory_space<vmem>>, %arg5: memref<1x256xf32, #tpu.memory_space<vmem>>, %arg6: memref<256x256xbf16, #tpu.memory_space<vmem>>, %arg7: memref<1x256xf32, #tpu.memory_space<vmem>>, %arg8: memref<256x128xbf16, #tpu.memory_space<vmem>>, %arg9: memref<1x128xf32, #tpu.memory_space<vmem>>, %arg10: memref<128x128xbf16, #tpu.memory_space<vmem>>) attributes {dimension_semantics = [#tpu.dimension_semantics<parallel>], iteration_bounds = array<i64: 1>, scalar_prefetch = 0 : i64, scratch_operands = 0 : i64, tpu.core_type = #tpu.core_type<tc>, window_params = [{transform_indices = @transform_0, window_bounds = array<i64: 128, 128>}, {pipeline_mode = #tpu.pipeline_mode<synchronous>, transform_indices = @transform_1, window_bounds = array<i64: 128, 512>}, {pipeline_mode = #tpu.pipeline_mode<synchronous>, transform_indices = @transform_2, window_bounds = array<i64: 1, 256>}, {pipeline_mode = #tpu.pipeline_mode<synchronous>, transform_indices = @transform_3, window_bounds = array<i64: 256, 256>}, {pipeline_mode = #tpu.pipeline_mode<synchronous>, transform_indices = @transform_4, window_bounds = array<i64: 1, 256>}, {pipeline_mode = #tpu.pipeline_mode<synchronous>, transform_indices = @transform_5, window_bounds = array<i64: 256, 256>}, {pipeline_mode = #tpu.pipeline_mode<synchronous>, transform_indices = @transform_6, window_bounds = array<i64: 1, 256>}, {pipeline_mode = #tpu.pipeline_mode<synchronous>, transform_indices = @transform_7, window_bounds = array<i64: 256, 128>}, {pipeline_mode = #tpu.pipeline_mode<synchronous>, transform_indices = @transform_8, window_bounds = array<i64: 1, 128>}, {transform_indices = @transform_9, window_bounds = array<i64: 128, 128>}]} {
    %c0 = arith.constant 0 : index
    %c0_0 = arith.constant 0 : index
    %0 = vector.load %arg1[%c0, %c0_0] : memref<128x128xbf16, #tpu.memory_space<vmem>>, vector<128x128xbf16>
    %c0_1 = arith.constant 0 : index
    %c0_2 = arith.constant 0 : index
    %1 = vector.load %arg2[%c0_1, %c0_2] : memref<128x512xbf16, #tpu.memory_space<vmem>>, vector<128x512xbf16>
    %cst = arith.constant dense<0.000000e+00> : vector<128x512xf32>
    %2 = tpu.matmul %0, %1, %cst {dimension_numbers = #tpu.dot_dimension_numbers<[1], [0], [0], [1], [0, 0, 1, 1], [], []>} : vector<128x128xbf16>, vector<128x512xbf16>, vector<128x512xf32> -> vector<128x512xf32>
    %3 = vector.extract_strided_slice %2 {offsets = [0, 0], sizes = [128, 256], strides = [1, 1]} : vector<128x512xf32> to vector<128x256xf32>
    %c0_3 = arith.constant 0 : index
    %c0_4 = arith.constant 0 : index
    %4 = vector.load %arg3[%c0_3, %c0_4] : memref<1x256xf32, #tpu.memory_space<vmem>>, vector<1x256xf32>
    %5 = vector.broadcast %4 : vector<1x256xf32> to vector<128x256xf32>
    %6 = arith.addf %3, %5 : vector<128x256xf32>
    %cst_5 = arith.constant 0.000000e+00 : f32
    %7 = vector.broadcast %cst_5 : f32 to vector<128x256xf32>
    %8 = arith.cmpf ogt, %6, %7 : vector<128x256xf32>
    %cst_6 = arith.constant 0.00999999977 : f32
    %9 = vector.broadcast %cst_6 : f32 to vector<128x256xf32>
    %10 = arith.mulf %9, %6 : vector<128x256xf32>
    %11 = arith.select %8, %6, %10 : vector<128x256xi1>, vector<128x256xf32>
    %12 = vector.extract_strided_slice %2 {offsets = [0, 256], sizes = [128, 256], strides = [1, 1]} : vector<128x512xf32> to vector<128x256xf32>
    %13 = arith.truncf %11 : vector<128x256xf32> to vector<128x256xbf16>
    %c0_7 = arith.constant 0 : index
    %c0_8 = arith.constant 0 : index
    %14 = vector.load %arg4[%c0_7, %c0_8] : memref<256x256xbf16, #tpu.memory_space<vmem>>, vector<256x256xbf16>
    %cst_9 = arith.constant dense<0.000000e+00> : vector<128x256xf32>
    %15 = tpu.matmul %13, %14, %cst_9 {dimension_numbers = #tpu.dot_dimension_numbers<[1], [0], [0], [1], [0, 0, 1, 1], [], []>} : vector<128x256xbf16>, vector<256x256xbf16>, vector<128x256xf32> -> vector<128x256xf32>
    %16 = arith.addf %12, %15 : vector<128x256xf32>
    %c0_10 = arith.constant 0 : index
    %c0_11 = arith.constant 0 : index
    %17 = vector.load %arg5[%c0_10, %c0_11] : memref<1x256xf32, #tpu.memory_space<vmem>>, vector<1x256xf32>
    %18 = vector.broadcast %17 : vector<1x256xf32> to vector<128x256xf32>
    %19 = arith.addf %16, %18 : vector<128x256xf32>
    %cst_12 = arith.constant 0.000000e+00 : f32
    %20 = vector.broadcast %cst_12 : f32 to vector<128x256xf32>
    %21 = arith.cmpf ogt, %19, %20 : vector<128x256xf32>
    %cst_13 = arith.constant 0.00999999977 : f32
    %22 = vector.broadcast %cst_13 : f32 to vector<128x256xf32>
    %23 = arith.mulf %22, %19 : vector<128x256xf32>
    %24 = arith.select %21, %19, %23 : vector<128x256xi1>, vector<128x256xf32>
    %25 = arith.truncf %24 : vector<128x256xf32> to vector<128x256xbf16>
    %c0_14 = arith.constant 0 : index
    %c0_15 = arith.constant 0 : index
    %26 = vector.load %arg6[%c0_14, %c0_15] : memref<256x256xbf16, #tpu.memory_space<vmem>>, vector<256x256xbf16>
    %cst_16 = arith.constant dense<0.000000e+00> : vector<128x256xf32>
    %27 = tpu.matmul %25, %26, %cst_16 {dimension_numbers = #tpu.dot_dimension_numbers<[1], [0], [0], [1], [0, 0, 1, 1], [], []>} : vector<128x256xbf16>, vector<256x256xbf16>, vector<128x256xf32> -> vector<128x256xf32>
    %c0_17 = arith.constant 0 : index
    %c0_18 = arith.constant 0 : index
    %28 = vector.load %arg7[%c0_17, %c0_18] : memref<1x256xf32, #tpu.memory_space<vmem>>, vector<1x256xf32>
    %29 = vector.broadcast %28 : vector<1x256xf32> to vector<128x256xf32>
    %30 = arith.addf %27, %29 : vector<128x256xf32>
    %cst_19 = arith.constant 0.000000e+00 : f32
    %31 = vector.broadcast %cst_19 : f32 to vector<128x256xf32>
    %32 = arith.cmpf ogt, %30, %31 : vector<128x256xf32>
    %cst_20 = arith.constant 0.00999999977 : f32
    %33 = vector.broadcast %cst_20 : f32 to vector<128x256xf32>
    %34 = arith.mulf %33, %30 : vector<128x256xf32>
    %35 = arith.select %32, %30, %34 : vector<128x256xi1>, vector<128x256xf32>
    %36 = arith.truncf %35 : vector<128x256xf32> to vector<128x256xbf16>
    %c0_21 = arith.constant 0 : index
    %c0_22 = arith.constant 0 : index
    %37 = vector.load %arg8[%c0_21, %c0_22] : memref<256x128xbf16, #tpu.memory_space<vmem>>, vector<256x128xbf16>
    %cst_23 = arith.constant dense<0.000000e+00> : vector<128x128xf32>
    %38 = tpu.matmul %36, %37, %cst_23 {dimension_numbers = #tpu.dot_dimension_numbers<[1], [0], [0], [1], [0, 0, 1, 1], [], []>} : vector<128x256xbf16>, vector<256x128xbf16>, vector<128x128xf32> -> vector<128x128xf32>
    %c0_24 = arith.constant 0 : index
    %c0_25 = arith.constant 0 : index
    %39 = vector.load %arg9[%c0_24, %c0_25] : memref<1x128xf32, #tpu.memory_space<vmem>>, vector<1x128xf32>
    %40 = vector.broadcast %39 : vector<1x128xf32> to vector<128x128xf32>
    %41 = arith.addf %38, %40 : vector<128x128xf32>
    %42 = arith.truncf %41 : vector<128x128xf32> to vector<128x128xbf16>
    %c0_26 = arith.constant 0 : index
    %c0_27 = arith.constant 0 : index
    %43 = vector.load %arg10[%c0_26, %c0_27] : memref<128x128xbf16, #tpu.memory_space<vmem>>, vector<128x128xbf16>
    tpu.vector_store %arg10[%c0_26, %c0_27], %42 {strides = array<i32>} : memref<128x128xbf16, #tpu.memory_space<vmem>>, vector<128x128xbf16>,
    return
  }
  func.func @transform_0(%arg0: i32) -> (i32, i32) {
    %c0_i32 = arith.constant 0 : i32
    %c0_i32_0 = arith.constant 0 : i32
    return %arg0, %c0_i32 : i32, i32
  }
  func.func @transform_1(%arg0: i32) -> (i32, i32) {
    %c0_i32 = arith.constant 0 : i32
    %c0_i32_0 = arith.constant 0 : i32
    %c0_i32_1 = arith.constant 0 : i32
    return %c0_i32, %c0_i32_0 : i32, i32
  }
  func.func @transform_2(%arg0: i32) -> (i32, i32) {
    %c0_i32 = arith.constant 0 : i32
    %c0_i32_0 = arith.constant 0 : i32
    %c0_i32_1 = arith.constant 0 : i32
    return %c0_i32, %c0_i32_0 : i32, i32
  }
  func.func @transform_3(%arg0: i32) -> (i32, i32) {
    %c0_i32 = arith.constant 0 : i32
    %c0_i32_0 = arith.constant 0 : i32
    %c0_i32_1 = arith.constant 0 : i32
    return %c0_i32, %c0_i32_0 : i32, i32
  }
  func.func @transform_4(%arg0: i32) -> (i32, i32) {
    %c0_i32 = arith.constant 0 : i32
    %c0_i32_0 = arith.constant 0 : i32
    %c0_i32_1 = arith.constant 0 : i32
    return %c0_i32, %c0_i32_0 : i32, i32
  }
  func.func @transform_5(%arg0: i32) -> (i32, i32) {
    %c0_i32 = arith.constant 0 : i32
    %c0_i32_0 = arith.constant 0 : i32
    %c0_i32_1 = arith.constant 0 : i32
    return %c0_i32, %c0_i32_0 : i32, i32
  }
  func.func @transform_6(%arg0: i32) -> (i32, i32) {
    %c0_i32 = arith.constant 0 : i32
    %c0_i32_0 = arith.constant 0 : i32
    %c0_i32_1 = arith.constant 0 : i32
    return %c0_i32, %c0_i32_0 : i32, i32
  }
  func.func @transform_7(%arg0: i32) -> (i32, i32) {
    %c0_i32 = arith.constant 0 : i32
    %c0_i32_0 = arith.constant 0 : i32
    %c0_i32_1 = arith.constant 0 : i32
    return %c0_i32, %c0_i32_0 : i32, i32
  }
  func.func @transform_8(%arg0: i32) -> (i32, i32) {
    %c0_i32 = arith.constant 0 : i32
    %c0_i32_0 = arith.constant 0 : i32
    %c0_i32_1 = arith.constant 0 : i32
    return %c0_i32, %c0_i32_0 : i32, i32
  }
  func.func @transform_9(%arg0: i32) -> (i32, i32) {
    %c0_i32 = arith.constant 0 : i32
    %c0_i32_0 = arith.constant 0 : i32
    return %arg0, %c0_i32 : i32, i32
  }
}

</mosaic_0001>

<llo_original>
// kernel: pe_grid_forward.1
$region0: #{pe_grid_forward.1}
  #allocation0 [shape = 'u32[]', space=smem, size = 0x4, offset = 0x4, fixed_abs, tag = 'smem constant byte address 0x4 - core index']
  #allocation1 [shape = 'u32[144,128]{1,0:T(1,128)}', space=vmem, size = 0x12000, scoped, tag = 'internal scratch']
  %s0 = inlined_call_operand.vmem [shape: bf16[128,128], index: 0, kind: input, shape index: {}]
  %s1 = inlined_call_operand.vmem [shape: bf16[128,512], index: 1, kind: input, shape index: {}]
  %s2 = inlined_call_operand.hbm [shape: f32[1,256], index: 2, kind: input, shape index: {}]
  %s3 = inlined_call_operand.hbm [shape: bf16[256,256], index: 3, kind: input, shape index: {}]
  %s4 = inlined_call_operand.hbm [shape: f32[1,256], index: 4, kind: input, shape index: {}]
  %s5 = inlined_call_operand.hbm [shape: bf16[256,256], index: 5, kind: input, shape index: {}]
  %s6 = inlined_call_operand.hbm [shape: f32[1,256], index: 6, kind: input, shape index: {}]
  %s7 = inlined_call_operand.vmem [shape: bf16[256,128], index: 7, kind: input, shape index: {}]
  %s8 = inlined_call_operand.hbm [shape: f32[1,128], index: 8, kind: input, shape index: {}]
  %s9 = inlined_call_operand.vmem [shape: bf16[128,128], index: 9, kind: output, shape index: {}]
  %s10 = sld [smem:[#allocation0]]
  $region70: #{pe_grid_forward.1} parent=0
    _
  %s12 = ssub.s32 1, %s10
  %s13 = scalar_select 0, %s12, %s10
  $region1: #{pe_grid_forward.1} parent=0
    #allocation2 [shape = 'u8[1024]{0}', space=vmem, size = 0x400, scoped, tag = 'input window, operand 2, single buffered']
    #allocation3 [shape = 's32[1]{0}', space=sflag, size = 0x4, scoped, tag = 'scoped memory for pe_grid_forward.1']
    #allocation4 [shape = 'u8[131072]{0}', space=vmem, size = 0x20000, scoped, tag = 'input window, operand 3, single buffered']
    #allocation5 [shape = 's32[1]{0}', space=sflag, size = 0x4, scoped, tag = 'scoped memory for pe_grid_forward.1']
    #allocation6 [shape = 'u8[1024]{0}', space=vmem, size = 0x400, scoped, tag = 'input window, operand 4, single buffered']
    #allocation7 [shape = 'u8[131072]{0}', space=vmem, size = 0x20000, scoped, tag = 'input window, operand 5, single buffered']
    #allocation8 [shape = 's32[1]{0}', space=sflag, size = 0x4, scoped, tag = 'scoped memory for pe_grid_forward.1']
    #allocation9 [shape = 'u8[1024]{0}', space=vmem, size = 0x400, scoped, tag = 'input window, operand 6, single buffered']
    #allocation10 [shape = 'u8[512]{0}', space=vmem, size = 0x400, scoped, tag = 'input window, operand 8, single buffered']
    #allocation11 [shape = 's32[1]{0}', space=sflag, size = 0x4, scoped, tag = 'scoped memory for pe_grid_forward.1']
    %14 = vsyncpa [#allocation3], 0
    %15 = vsyncpa [#allocation5], 0
    %16 = vsyncpa [#allocation8], 0
    %17 = vsyncpa [#allocation11], 0
    // Predicated region
    $region2: #{pe_grid_forward.1} parent=1 // pred_check
      _
    $region3: #{pe_grid_forward.1} parent=1 // pred_check_branch
      %19 = sbr.rel (0) target = $region5
    $region4: #{pe_grid_forward.1} parent=1 // pred_region
      _
    $region5: #{pe_grid_forward.1} parent=1 // pred_fallthru
      _
    // Predicated region
    $region6: #{pe_grid_forward.1} parent=1 // pred_check
      _
    $region7: #{pe_grid_forward.1} parent=1 // pred_check_branch
      %21 = sbr.rel (0) target = $region9
    $region8: #{pe_grid_forward.1} parent=1 // pred_region
      _
    $region9: #{pe_grid_forward.1} parent=1 // pred_fallthru
      _
    // Predicated region
    $region10: #{pe_grid_forward.1} parent=1 // pred_check
      _
    $region11: #{pe_grid_forward.1} parent=1 // pred_check_branch
      %23 = sbr.rel (0) target = $region13
    $region12: #{pe_grid_forward.1} parent=1 // pred_region
      %s25 = ssub.s32 32, 32
      %26 = vsyncadd [#allocation3], %s25
      %s28 = sshll.u32 [#allocation2], 4
      %s29 = int_to_ptr.vmem [resolvable:$true] %s28
      %31 = dma.hbm_to_vmem [thread:$0]  %s2, 32, %s29, [#allocation3]
    $region13: #{pe_grid_forward.1} parent=1 // pred_fallthru
      _
    // Predicated region
    $region14: #{pe_grid_forward.1} parent=1 // pred_check
      _
    $region15: #{pe_grid_forward.1} parent=1 // pred_check_branch
      %33 = sbr.rel (0) target = $region17
    $region16: #{pe_grid_forward.1} parent=1 // pred_region
      %s35 = ssub.s32 4096, 4096
      %36 = vsyncadd [#allocation5], %s35
      %s37 = sshll.u32 [#allocation4], 4
      %s38 = int_to_ptr.vmem [resolvable:$true] %s37
      %43 = dma.hbm_to_vmem [thread:$0]  %s3, 4096, %s38, [#allocation5], 128, 128, 8
    $region17: #{pe_grid_forward.1} parent=1 // pred_fallthru
      _
    // Predicated region
    $region18: #{pe_grid_forward.1} parent=1 // pred_check
      _
    $region19: #{pe_grid_forward.1} parent=1 // pred_check_branch
      %45 = sbr.rel (0) target = $region21
    $region20: #{pe_grid_forward.1} parent=1 // pred_region
      %s47 = ssub.s32 32, 32
      %48 = vsyncadd [#allocation5], %s47
      %s50 = sshll.u32 [#allocation6], 4
      %s51 = int_to_ptr.vmem [resolvable:$true] %s50
      %53 = dma.hbm_to_vmem [thread:$0]  %s4, 32, %s51, [#allocation5]
    $region21: #{pe_grid_forward.1} parent=1 // pred_fallthru
      _
    // Predicated region
    $region22: #{pe_grid_forward.1} parent=1 // pred_check
      _
    $region23: #{pe_grid_forward.1} parent=1 // pred_check_branch
      %55 = sbr.rel (0) target = $region25
    $region24: #{pe_grid_forward.1} parent=1 // pred_region
      %s57 = ssub.s32 4096, 4096
      %58 = vsyncadd [#allocation8], %s57
      %s59 = sshll.u32 [#allocation7], 4
      %s60 = int_to_ptr.vmem [resolvable:$true] %s59
      %65 = dma.hbm_to_vmem [thread:$0]  %s5, 4096, %s60, [#allocation8], 128, 128, 8
    $region25: #{pe_grid_forward.1} parent=1 // pred_fallthru
      _
    // Predicated region
    $region26: #{pe_grid_forward.1} parent=1 // pred_check
      _
    $region27: #{pe_grid_forward.1} parent=1 // pred_check_branch
      %67 = sbr.rel (0) target = $region29
    $region28: #{pe_grid_forward.1} parent=1 // pred_region
      %s69 = ssub.s32 32, 32
      %70 = vsyncadd [#allocation8], %s69
      %s72 = sshll.u32 [#allocation9], 4
      %s73 = int_to_ptr.vmem [resolvable:$true] %s72
      %75 = dma.hbm_to_vmem [thread:$0]  %s6, 32, %s73, [#allocation8]
    $region29: #{pe_grid_forward.1} parent=1 // pred_fallthru
      _
    // Predicated region
    $region30: #{pe_grid_forward.1} parent=1 // pred_check
      _
    $region31: #{pe_grid_forward.1} parent=1 // pred_check_branch
      %77 = sbr.rel (0) target = $region33
    $region32: #{pe_grid_forward.1} parent=1 // pred_region
      _
    $region33: #{pe_grid_forward.1} parent=1 // pred_fallthru
      _
    // Predicated region
    $region34: #{pe_grid_forward.1} parent=1 // pred_check
      _
    $region35: #{pe_grid_forward.1} parent=1 // pred_check_branch
      %79 = sbr.rel (0) target = $region37
    $region36: #{pe_grid_forward.1} parent=1 // pred_region
      %s81 = ssub.s32 16, 16
      %82 = vsyncadd [#allocation11], %s81
      %s84 = sshll.u32 [#allocation10], 4
      %s85 = int_to_ptr.vmem [resolvable:$true] %s84
      %87 = dma.hbm_to_vmem [thread:$0]  %s8, 16, %s85, [#allocation11]
    $region37: #{pe_grid_forward.1} parent=1 // pred_fallthru
      _
    // Predicated region
    $region38: #{pe_grid_forward.1} parent=1 // pred_check
      _
    $region39: #{pe_grid_forward.1} parent=1 // pred_check_branch
      %89 = sbr.rel (0) target = $region41
    $region40: #{pe_grid_forward.1} parent=1 // pred_region
      %90 = dma.done [#allocation3], 32
    $region41: #{pe_grid_forward.1} parent=1 // pred_fallthru
      _
    // Predicated region
    $region42: #{pe_grid_forward.1} parent=1 // pred_check
      _
    $region43: #{pe_grid_forward.1} parent=1 // pred_check_branch
      %92 = sbr.rel (0) target = $region45
    $region44: #{pe_grid_forward.1} parent=1 // pred_region
      %93 = dma.done [#allocation5], 4096
    $region45: #{pe_grid_forward.1} parent=1 // pred_fallthru
      _
    // Predicated region
    $region46: #{pe_grid_forward.1} parent=1 // pred_check
      _
    $region47: #{pe_grid_forward.1} parent=1 // pred_check_branch
      %95 = sbr.rel (0) target = $region49
    $region48: #{pe_grid_forward.1} parent=1 // pred_region
      %96 = dma.done [#allocation5], 32
    $region49: #{pe_grid_forward.1} parent=1 // pred_fallthru
      _
    // Predicated region
    $region50: #{pe_grid_forward.1} parent=1 // pred_check
      _
    $region51: #{pe_grid_forward.1} parent=1 // pred_check_branch
      %98 = sbr.rel (0) target = $region53
    $region52: #{pe_grid_forward.1} parent=1 // pred_region
      %99 = dma.done [#allocation8], 4096
    $region53: #{pe_grid_forward.1} parent=1 // pred_fallthru
      _
    // Predicated region
    $region54: #{pe_grid_forward.1} parent=1 // pred_check
      _
    $region55: #{pe_grid_forward.1} parent=1 // pred_check_branch
      %101 = sbr.rel (0) target = $region57
    $region56: #{pe_grid_forward.1} parent=1 // pred_region
      %102 = dma.done [#allocation8], 32
    $region57: #{pe_grid_forward.1} parent=1 // pred_fallthru
      _
    // Predicated region
    $region58: #{pe_grid_forward.1} parent=1 // pred_check
      _
    $region59: #{pe_grid_forward.1} parent=1 // pred_check_branch
      %104 = sbr.rel (0) target = $region61
    $region60: #{pe_grid_forward.1} parent=1 // pred_region
      %105 = dma.done [#allocation11], 16
    $region61: #{pe_grid_forward.1} parent=1 // pred_fallthru
      _
    %v107 = vld [vmem:[%s0] sm:$0xf]
    %v108 = vld [vmem:[%s0 + $0x4] sm:$0xf]
    %v109 = vld [vmem:[%s0 + $0x8] sm:$0xf]
    %v110 = vld [vmem:[%s0 + $0xc] sm:$0xf]
    %v111 = vld [vmem:[%s0 + $0x10] sm:$0xf]
    %v112 = vld [vmem:[%s0 + $0x14] sm:$0xf]
    %v113 = vld [vmem:[%s0 + $0x18] sm:$0xf]
    %v114 = vld [vmem:[%s0 + $0x1c] sm:$0xf]
    %v115 = vld [vmem:[%s0 + $0x20] sm:$0xf]
    %v116 = vld [vmem:[%s0 + $0x24] sm:$0xf]
    %v117 = vld [vmem:[%s0 + $0x28] sm:$0xf]
    %v118 = vld [vmem:[%s0 + $0x2c] sm:$0xf]
    %v119 = vld [vmem:[%s0 + $0x30] sm:$0xf]
    %v120 = vld [vmem:[%s0 + $0x34] sm:$0xf]
    %v121 = vld [vmem:[%s0 + $0x38] sm:$0xf]
    %v122 = vld [vmem:[%s0 + $0x3c] sm:$0xf]
    %v123 = vld [vmem:[%s1] sm:$0xff]
    %v124 = vld [vmem:[%s1 + $0x8] sm:$0xff]
    %v125 = vld [vmem:[%s1 + $0x10] sm:$0xff]
    %v126 = vld [vmem:[%s1 + $0x18] sm:$0xff]
    %v127 = vld [vmem:[%s1 + $0x20] sm:$0xff]
    %v128 = vld [vmem:[%s1 + $0x28] sm:$0xff]
    %v129 = vld [vmem:[%s1 + $0x30] sm:$0xff]
    %v130 = vld [vmem:[%s1 + $0x38] sm:$0xff]
    %v131 = vld [vmem:[%s1 + $0x40] sm:$0xff]
    %v132 = vld [vmem:[%s1 + $0x48] sm:$0xff]
    %v133 = vld [vmem:[%s1 + $0x50] sm:$0xff]
    %v134 = vld [vmem:[%s1 + $0x58] sm:$0xff]
    %v135 = vld [vmem:[%s1 + $0x60] sm:$0xff]
    %v136 = vld [vmem:[%s1 + $0x68] sm:$0xff]
    %v137 = vld [vmem:[%s1 + $0x70] sm:$0xff]
    %v138 = vld [vmem:[%s1 + $0x78] sm:$0xff]
    %v139 = vld [vmem:[%s1 + $0x80] sm:$0xff]
    %v140 = vld [vmem:[%s1 + $0x88] sm:$0xff]
    %v141 = vld [vmem:[%s1 + $0x90] sm:$0xff]
    %v142 = vld [vmem:[%s1 + $0x98] sm:$0xff]
    %v143 = vld [vmem:[%s1 + $0xa0] sm:$0xff]
    %v144 = vld [vmem:[%s1 + $0xa8] sm:$0xff]
    %v145 = vld [vmem:[%s1 + $0xb0] sm:$0xff]
    %v146 = vld [vmem:[%s1 + $0xb8] sm:$0xff]
    %v147 = vld [vmem:[%s1 + $0xc0] sm:$0xff]
    %v148 = vld [vmem:[%s1 + $0xc8] sm:$0xff]
    %v149 = vld [vmem:[%s1 + $0xd0] sm:$0xff]
    %v150 = vld [vmem:[%s1 + $0xd8] sm:$0xff]
    %v151 = vld [vmem:[%s1 + $0xe0] sm:$0xff]
    %v152 = vld [vmem:[%s1 + $0xe8] sm:$0xff]
    %v153 = vld [vmem:[%s1 + $0xf0] sm:$0xff]
    %v154 = vld [vmem:[%s1 + $0xf8] sm:$0xff]
    %v171 = vunpack.c.l.b16 %v107
    %v172 = vunpack.c.l.b16 %v108
    %v173 = vunpack.c.l.b16 %v109
    %v174 = vunpack.c.l.b16 %v110
    %v175 = vunpack.c.l.b16 %v111
    %v176 = vunpack.c.l.b16 %v112
    %v177 = vunpack.c.l.b16 %v113
    %v178 = vunpack.c.l.b16 %v114
    %v179 = vunpack.c.l.b16 %v115
    %v180 = vunpack.c.l.b16 %v116
    %v181 = vunpack.c.l.b16 %v117
    %v182 = vunpack.c.l.b16 %v118
    %v183 = vunpack.c.l.b16 %v119
    %v184 = vunpack.c.l.b16 %v120
    %v185 = vunpack.c.l.b16 %v121
    %v186 = vunpack.c.l.b16 %v122
    %v187 = vpack.c.b16 %v172, %v171
    %v188 = vpack.c.b16 %v174, %v173
    %v189 = vpack.c.b16 %v176, %v175
    %v190 = vpack.c.b16 %v178, %v177
    %v191 = vpack.c.b16 %v180, %v179
    %v192 = vpack.c.b16 %v182, %v181
    %v193 = vpack.c.b16 %v184, %v183
    %v194 = vpack.c.b16 %v186, %v185
    %v235 = vunpack.c.l.b16 %v123
    %v236 = vunpack.c.h.b16 %v123
    %v237 = vunpack.c.l.b16 %v124
    %v238 = vunpack.c.h.b16 %v124
    %v239 = vunpack.c.l.b16 %v125
    %v240 = vunpack.c.h.b16 %v125
    %v241 = vunpack.c.l.b16 %v126
    %v242 = vunpack.c.h.b16 %v126
    %v243 = vunpack.c.l.b16 %v127
    %v244 = vunpack.c.h.b16 %v127
    %v245 = vunpack.c.l.b16 %v128
    %v246 = vunpack.c.h.b16 %v128
    %v247 = vunpack.c.l.b16 %v129
    %v248 = vunpack.c.h.b16 %v129
    %v249 = vunpack.c.l.b16 %v130
    %v250 = vunpack.c.h.b16 %v130
    %v251 = vunpack.c.l.b16 %v131
    %v252 = vunpack.c.h.b16 %v131
    %v253 = vunpack.c.l.b16 %v132
    %v254 = vunpack.c.h.b16 %v132
    %v255 = vunpack.c.l.b16 %v133
    %v256 = vunpack.c.h.b16 %v133
    %v257 = vunpack.c.l.b16 %v134
    %v258 = vunpack.c.h.b16 %v134
    %v259 = vunpack.c.l.b16 %v135
    %v260 = vunpack.c.h.b16 %v135
    %v261 = vunpack.c.l.b16 %v136
    %v262 = vunpack.c.h.b16 %v136
    %v263 = vunpack.c.l.b16 %v137
    %v264 = vunpack.c.h.b16 %v137
    %v265 = vunpack.c.l.b16 %v138
    %v266 = vunpack.c.h.b16 %v138
    %v267 = vunpack.c.l.b16 %v139
    %v268 = vunpack.c.h.b16 %v139
    %v269 = vunpack.c.l.b16 %v140
    %v270 = vunpack.c.h.b16 %v140
    %v271 = vunpack.c.l.b16 %v141
    %v272 = vunpack.c.h.b16 %v141
    %v273 = vunpack.c.l.b16 %v142
    %v274 = vunpack.c.h.b16 %v142
    %v275 = vunpack.c.l.b16 %v143
    %v276 = vunpack.c.h.b16 %v143
    %v277 = vunpack.c.l.b16 %v144
    %v278 = vunpack.c.h.b16 %v144
    %v279 = vunpack.c.l.b16 %v145
    %v280 = vunpack.c.h.b16 %v145
    %v281 = vunpack.c.l.b16 %v146
    %v282 = vunpack.c.h.b16 %v146
    %v283 = vunpack.c.l.b16 %v147
    %v284 = vunpack.c.h.b16 %v147
    %v285 = vunpack.c.l.b16 %v148
    %v286 = vunpack.c.h.b16 %v148
    %v287 = vunpack.c.l.b16 %v149
    %v288 = vunpack.c.h.b16 %v149
    %v289 = vunpack.c.l.b16 %v150
    %v290 = vunpack.c.h.b16 %v150
    %v291 = vunpack.c.l.b16 %v151
    %v292 = vunpack.c.h.b16 %v151
    %v293 = vunpack.c.l.b16 %v152
    %v294 = vunpack.c.h.b16 %v152
    %v295 = vunpack.c.l.b16 %v153
    %v296 = vunpack.c.h.b16 %v153
    %v297 = vunpack.c.l.b16 %v154
    %v298 = vunpack.c.h.b16 %v154
    %v299 = vpack.c.b16 %v239, %v235
    %v300 = vpack.c.b16 %v240, %v236
    %v301 = vpack.c.b16 %v241, %v237
    %v302 = vpack.c.b16 %v242, %v238
    %v303 = vpack.c.b16 %v247, %v243
    %v304 = vpack.c.b16 %v248, %v244
    %v305 = vpack.c.b16 %v249, %v245
    %v306 = vpack.c.b16 %v250, %v246
    %v307 = vpack.c.b16 %v255, %v251
    %v308 = vpack.c.b16 %v256, %v252
    %v309 = vpack.c.b16 %v257, %v253
    %v310 = vpack.c.b16 %v258, %v254
    %v311 = vpack.c.b16 %v263, %v259
    %v312 = vpack.c.b16 %v264, %v260
    %v313 = vpack.c.b16 %v265, %v261
    %v314 = vpack.c.b16 %v266, %v262
    %v315 = vpack.c.b16 %v271, %v267
    %v316 = vpack.c.b16 %v272, %v268
    %v317 = vpack.c.b16 %v273, %v269
    %v318 = vpack.c.b16 %v274, %v270
    %v319 = vpack.c.b16 %v279, %v275
    %v320 = vpack.c.b16 %v280, %v276
    %v321 = vpack.c.b16 %v281, %v277
    %v322 = vpack.c.b16 %v282, %v278
    %v323 = vpack.c.b16 %v287, %v283
    %v324 = vpack.c.b16 %v288, %v284
    %v325 = vpack.c.b16 %v289, %v285
    %v326 = vpack.c.b16 %v290, %v286
    %v327 = vpack.c.b16 %v295, %v291
    %v328 = vpack.c.b16 %v296, %v292
    %v329 = vpack.c.b16 %v297, %v293
    %v330 = vpack.c.b16 %v298, %v294
    %363 = vmatprep.subr.bf16.mxu0 %v300
    %364 = vmatpush1.bf16.msra.mxu0 %v299
    %365 = vmatprep.subr.bf16.mxu0 %v304
    %366 = vmatpush1.bf16.msra.mxu0 %v303
    %367 = vmatprep.subr.bf16.mxu0 %v308
    %368 = vmatpush1.bf16.msra.mxu0 %v307
    %369 = vmatprep.subr.bf16.mxu0 %v312
    %370 = vmatpush1.bf16.msra.mxu0 %v311
    %371 = vmatprep.subr.bf16.mxu0 %v316
    %372 = vmatpush1.bf16.msra.mxu0 %v315
    %373 = vmatprep.subr.bf16.mxu0 %v320
    %374 = vmatpush1.bf16.msra.mxu0 %v319
    %375 = vmatprep.subr.bf16.mxu0 %v324
    %376 = vmatpush1.bf16.msra.mxu0 %v323
    %377 = vmatprep.subr.bf16.mxu0 %v328
    %378 = vmatpush1.bf16.msra.mxu0 %v327
    %379 = vmatprep.subr.bf16.mxu0 0
    %380 = vmatpush1.bf16.msra.mxu0 0
    %381 = vmatprep.subr.bf16.mxu0 0
    %382 = vmatpush1.bf16.msra.mxu0 0
    %383 = vmatprep.subr.bf16.mxu0 0
    %384 = vmatpush1.bf16.msra.mxu0 0
    %385 = vmatprep.subr.bf16.mxu0 0
    %386 = vmatpush1.bf16.msra.mxu0 0
    %387 = vmatprep.subr.bf16.mxu0 0
    %388 = vmatpush1.bf16.msra.mxu0 0
    %389 = vmatprep.subr.bf16.mxu0 0
    %390 = vmatpush1.bf16.msra.mxu0 0
    %391 = vmatprep.subr.bf16.mxu0 0
    %392 = vmatpush1.bf16.msra.mxu0 0
    %393 = vmatprep.subr.bf16.mxu0 0
    %394 = vmatpush1.bf16.msra.mxu0 0
    %395 = vmatprep.mubr.bf16.mxu0 0
    %396 = vmatmul.mubr.bf16.gmra.mrb[0].mxu0 %v187
    %v397 = vpop.f32.mrb[0].mxu0
    %v398 = vadd.f32 0.0, %v397
    %v399 = vpop.f32.mrb[0].mxu0
    %v400 = vadd.f32 0.0, %v399
    %v401 = vpop.f32.mrb[0].mxu0
    %v402 = vadd.f32 0.0, %v401
    %v403 = vpop.f32.mrb[0].mxu0
    %v404 = vadd.f32 0.0, %v403
    %405 = vmatprep.mubr.bf16.mxu0 0
    %406 = vmatmul.mubr.bf16.gmra.mrb[0].mxu0 %v188
    %v407 = vpop.f32.mrb[0].mxu0
    %v408 = vadd.f32 0.0, %v407
    %v409 = vpop.f32.mrb[0].mxu0
    %v410 = vadd.f32 0.0, %v409
    %v411 = vpop.f32.mrb[0].mxu0
    %v412 = vadd.f32 0.0, %v411
    %v413 = vpop.f32.mrb[0].mxu0
    %v414 = vadd.f32 0.0, %v413
    %415 = vmatprep.mubr.bf16.mxu0 0
    %416 = vmatmul.mubr.bf16.gmra.mrb[0].mxu0 %v189
    %v417 = vpop.f32.mrb[0].mxu0
    %v418 = vadd.f32 0.0, %v417
    %v419 = vpop.f32.mrb[0].mxu0
    %v420 = vadd.f32 0.0, %v419
    %v421 = vpop.f32.mrb[0].mxu0
    %v422 = vadd.f32 0.0, %v421
    %v423 = vpop.f32.mrb[0].mxu0
    %v424 = vadd.f32 0.0, %v423
    %425 = vmatprep.mubr.bf16.mxu0 0
    %426 = vmatmul.mubr.bf16.gmra.mrb[0].mxu0 %v190
    %v427 = vpop.f32.mrb[0].mxu0
    %v428 = vadd.f32 0.0, %v427
    %v429 = vpop.f32.mrb[0].mxu0
    %v430 = vadd.f32 0.0, %v429
    %v431 = vpop.f32.mrb[0].mxu0
    %v432 = vadd.f32 0.0, %v431
    %v433 = vpop.f32.mrb[0].mxu0
    %v434 = vadd.f32 0.0, %v433
    %435 = vmatprep.mubr.bf16.mxu0 0
    %436 = vmatmul.mubr.bf16.gmra.mrb[0].mxu0 %v191
    %v437 = vpop.f32.mrb[0].mxu0
    %v438 = vadd.f32 0.0, %v437
    %v439 = vpop.f32.mrb[0].mxu0
    %v440 = vadd.f32 0.0, %v439
    %v441 = vpop.f32.mrb[0].mxu0
    %v442 = vadd.f32 0.0, %v441
    %v443 = vpop.f32.mrb[0].mxu0
    %v444 = vadd.f32 0.0, %v443
    %445 = vmatprep.mubr.bf16.mxu0 0
    %446 = vmatmul.mubr.bf16.gmra.mrb[0].mxu0 %v192
    %v447 = vpop.f32.mrb[0].mxu0
    %v448 = vadd.f32 0.0, %v447
    %v449 = vpop.f32.mrb[0].mxu0
    %v450 = vadd.f32 0.0, %v449
    %v451 = vpop.f32.mrb[0].mxu0
    %v452 = vadd.f32 0.0, %v451
    %v453 = vpop.f32.mrb[0].mxu0
    %v454 = vadd.f32 0.0, %v453
    %455 = vmatprep.mubr.bf16.mxu0 0
    %456 = vmatmul.mubr.bf16.gmra.mrb[0].mxu0 %v193
    %v457 = vpop.f32.mrb[0].mxu0
    %v458 = vadd.f32 0.0, %v457
    %v459 = vpop.f32.mrb[0].mxu0
    %v460 = vadd.f32 0.0, %v459
    %v461 = vpop.f32.mrb[0].mxu0
    %v462 = vadd.f32 0.0, %v461
    %v463 = vpop.f32.mrb[0].mxu0
    %v464 = vadd.f32 0.0, %v463
    %465 = vmatprep.mubr.bf16.mxu0 0
    %466 = vmatmul.mubr.bf16.gmra.mrb[0].mxu0 %v194
    %v467 = vpop.f32.mrb[0].mxu0
    %v468 = vadd.f32 0.0, %v467
    %v469 = vpop.f32.mrb[0].mxu0
    %v470 = vadd.f32 0.0, %v469
    %v471 = vpop.f32.mrb[0].mxu0
    %v472 = vadd.f32 0.0, %v471
    %v473 = vpop.f32.mrb[0].mxu0
    %v474 = vadd.f32 0.0, %v473
    %475 = vdwg.mxu0
    %476 = vmatprep.subr.bf16.mxu0 %v302
    %477 = vmatpush1.bf16.msra.mxu0 %v301
    %478 = vmatprep.subr.bf16.mxu0 %v306
    %479 = vmatpush1.bf16.msra.mxu0 %v305
    %480 = vmatprep.subr.bf16.mxu0 %v310
    %481 = vmatpush1.bf16.msra.mxu0 %v309
    %482 = vmatprep.subr.bf16.mxu0 %v314
    %483 = vmatpush1.bf16.msra.mxu0 %v313
    %484 = vmatprep.subr.bf16.mxu0 %v318
    %485 = vmatpush1.bf16.msra.mxu0 %v317
    %486 = vmatprep.subr.bf16.mxu0 %v322
    %487 = vmatpush1.bf16.msra.mxu0 %v321
    %488 = vmatprep.subr.bf16.mxu0 %v326
    %489 = vmatpush1.bf16.msra.mxu0 %v325
    %490 = vmatprep.subr.bf16.mxu0 %v330
    %491 = vmatpush1.bf16.msra.mxu0 %v329
    %492 = vmatprep.subr.bf16.mxu0 0
    %493 = vmatpush1.bf16.msra.mxu0 0
    %494 = vmatprep.subr.bf16.mxu0 0
    %495 = vmatpush1.bf16.msra.mxu0 0
    %496 = vmatprep.subr.bf16.mxu0 0
    %497 = vmatpush1.bf16.msra.mxu0 0
    %498 = vmatprep.subr.bf16.mxu0 0
    %499 = vmatpush1.bf16.msra.mxu0 0
    %500 = vmatprep.subr.bf16.mxu0 0
    %501 = vmatpush1.bf16.msra.mxu0 0
    %502 = vmatprep.subr.bf16.mxu0 0
    %503 = vmatpush1.bf16.msra.mxu0 0
    %504 = vmatprep.subr.bf16.mxu0 0
    %505 = vmatpush1.bf16.msra.mxu0 0
    %506 = vmatprep.subr.bf16.mxu0 0
    %507 = vmatpush1.bf16.msra.mxu0 0
    %508 = vmatprep.mubr.bf16.mxu0 0
    %509 = vmatmul.mubr.bf16.gmra.mrb[0].mxu0 %v187
    %v510 = vpop.f32.mrb[0].mxu0
    %v511 = vadd.f32 0.0, %v510
    %v512 = vpop.f32.mrb[0].mxu0
    %v513 = vadd.f32 0.0, %v512
    %v514 = vpop.f32.mrb[0].mxu0
    %v515 = vadd.f32 0.0, %v514
    %v516 = vpop.f32.mrb[0].mxu0
    %v517 = vadd.f32 0.0, %v516
    %518 = vmatprep.mubr.bf16.mxu0 0
    %519 = vmatmul.mubr.bf16.gmra.mrb[0].mxu0 %v188
    %v520 = vpop.f32.mrb[0].mxu0
    %v521 = vadd.f32 0.0, %v520
    %v522 = vpop.f32.mrb[0].mxu0
    %v523 = vadd.f32 0.0, %v522
    %v524 = vpop.f32.mrb[0].mxu0
    %v525 = vadd.f32 0.0, %v524
    %v526 = vpop.f32.mrb[0].mxu0
    %v527 = vadd.f32 0.0, %v526
    %528 = vmatprep.mubr.bf16.mxu0 0
    %529 = vmatmul.mubr.bf16.gmra.mrb[0].mxu0 %v189
    %v530 = vpop.f32.mrb[0].mxu0
    %v531 = vadd.f32 0.0, %v530
    %v532 = vpop.f32.mrb[0].mxu0
    %v533 = vadd.f32 0.0, %v532
    %v534 = vpop.f32.mrb[0].mxu0
    %v535 = vadd.f32 0.0, %v534
    %v536 = vpop.f32.mrb[0].mxu0
    %v537 = vadd.f32 0.0, %v536
    %538 = vmatprep.mubr.bf16.mxu0 0
    %539 = vmatmul.mubr.bf16.gmra.mrb[0].mxu0 %v190
    %v540 = vpop.f32.mrb[0].mxu0
    %v541 = vadd.f32 0.0, %v540
    %v542 = vpop.f32.mrb[0].mxu0
    %v543 = vadd.f32 0.0, %v542
    %v544 = vpop.f32.mrb[0].mxu0
    %v545 = vadd.f32 0.0, %v544
    %v546 = vpop.f32.mrb[0].mxu0
    %v547 = vadd.f32 0.0, %v546
    %548 = vmatprep.mubr.bf16.mxu0 0
    %549 = vmatmul.mubr.bf16.gmra.mrb[0].mxu0 %v191
    %v550 = vpop.f32.mrb[0].mxu0
    %v551 = vadd.f32 0.0, %v550
    %v552 = vpop.f32.mrb[0].mxu0
    %v553 = vadd.f32 0.0, %v552
    %v554 = vpop.f32.mrb[0].mxu0
    %v555 = vadd.f32 0.0, %v554
    %v556 = vpop.f32.mrb[0].mxu0
    %v557 = vadd.f32 0.0, %v556
    %558 = vmatprep.mubr.bf16.mxu0 0
    %559 = vmatmul.mubr.bf16.gmra.mrb[0].mxu0 %v192
    %v560 = vpop.f32.mrb[0].mxu0
    %v561 = vadd.f32 0.0, %v560
    %v562 = vpop.f32.mrb[0].mxu0
    %v563 = vadd.f32 0.0, %v562
    %v564 = vpop.f32.mrb[0].mxu0
    %v565 = vadd.f32 0.0, %v564
    %v566 = vpop.f32.mrb[0].mxu0
    %v567 = vadd.f32 0.0, %v566
    %568 = vmatprep.mubr.bf16.mxu0 0
    %569 = vmatmul.mubr.bf16.gmra.mrb[0].mxu0 %v193
    %v570 = vpop.f32.mrb[0].mxu0
    %v571 = vadd.f32 0.0, %v570
    %v572 = vpop.f32.mrb[0].mxu0
    %v573 = vadd.f32 0.0, %v572
    %v574 = vpop.f32.mrb[0].mxu0
    %v575 = vadd.f32 0.0, %v574
    %v576 = vpop.f32.mrb[0].mxu0
    %v577 = vadd.f32 0.0, %v576
    %578 = vmatprep.mubr.bf16.mxu0 0
    %579 = vmatmul.mubr.bf16.gmra.mrb[0].mxu0 %v194
    %v580 = vpop.f32.mrb[0].mxu0
    %v581 = vadd.f32 0.0, %v580
    %v582 = vpop.f32.mrb[0].mxu0
    %v583 = vadd.f32 0.0, %v582
    %v584 = vpop.f32.mrb[0].mxu0
    %v585 = vadd.f32 0.0, %v584
    %v586 = vpop.f32.mrb[0].mxu0
    %v587 = vadd.f32 0.0, %v586
    %588 = vdwg.mxu0
    %v589 = vld [vmem:[#allocation2] sm:$0x3]
    %v591 = vlaneseq
    %v592 = vshrl.u32 %v591, 7
    %v593 = vsub.s32 0, %v592
    %v594 = vrot.slane %v589, %v593
    %v595 = vlaneseq
    %v596 = vshrl.u32 %v595, 7
    %v597 = vsub.s32 1, %v596
    %v598 = vrot.slane %v589, %v597
    %v601 = vadd.f32 %v398, %v594
    %v602 = vadd.f32 %v400, %v598
    %v603 = vadd.f32 %v402, %v594
    %v604 = vadd.f32 %v404, %v598
    %v605 = vadd.f32 %v408, %v594
    %v606 = vadd.f32 %v410, %v598
    %v607 = vadd.f32 %v412, %v594
    %v608 = vadd.f32 %v414, %v598
    %v609 = vadd.f32 %v418, %v594
    %v610 = vadd.f32 %v420, %v598
    %v611 = vadd.f32 %v422, %v594
    %v612 = vadd.f32 %v424, %v598
    %v613 = vadd.f32 %v428, %v594
    %v614 = vadd.f32 %v430, %v598
    %v615 = vadd.f32 %v432, %v594
    %v616 = vadd.f32 %v434, %v598
    %v617 = vadd.f32 %v438, %v594
    %v618 = vadd.f32 %v440, %v598
    %v619 = vadd.f32 %v442, %v594
    %v620 = vadd.f32 %v444, %v598
    %v621 = vadd.f32 %v448, %v594
    %v622 = vadd.f32 %v450, %v598
    %v623 = vadd.f32 %v452, %v594
    %v624 = vadd.f32 %v454, %v598
    %v625 = vadd.f32 %v458, %v594
    %v626 = vadd.f32 %v460, %v598
    %v627 = vadd.f32 %v462, %v594
    %v628 = vadd.f32 %v464, %v598
    %v629 = vadd.f32 %v468, %v594
    %v630 = vadd.f32 %v470, %v598
    %v631 = vadd.f32 %v472, %v594
    %v632 = vadd.f32 %v474, %v598
    %vm633 = vcmp.gt.f32.partialorder %v601, 0.0
    %vm634 = vcmp.gt.f32.partialorder %v602, 0.0
    %vm635 = vcmp.gt.f32.partialorder %v603, 0.0
    %vm636 = vcmp.gt.f32.partialorder %v604, 0.0
    %vm637 = vcmp.gt.f32.partialorder %v605, 0.0
    %vm638 = vcmp.gt.f32.partialorder %v606, 0.0
    %vm639 = vcmp.gt.f32.partialorder %v607, 0.0
    %vm640 = vcmp.gt.f32.partialorder %v608, 0.0
    %vm641 = vcmp.gt.f32.partialorder %v609, 0.0
    %vm642 = vcmp.gt.f32.partialorder %v610, 0.0
    %vm643 = vcmp.gt.f32.partialorder %v611, 0.0
    %vm644 = vcmp.gt.f32.partialorder %v612, 0.0
    %vm645 = vcmp.gt.f32.partialorder %v613, 0.0
    %vm646 = vcmp.gt.f32.partialorder %v614, 0.0
    %vm647 = vcmp.gt.f32.partialorder %v615, 0.0
    %vm648 = vcmp.gt.f32.partialorder %v616, 0.0
    %vm649 = vcmp.gt.f32.partialorder %v617, 0.0
    %vm650 = vcmp.gt.f32.partialorder %v618, 0.0
    %vm651 = vcmp.gt.f32.partialorder %v619, 0.0
    %vm652 = vcmp.gt.f32.partialorder %v620, 0.0
    %vm653 = vcmp.gt.f32.partialorder %v621, 0.0
    %vm654 = vcmp.gt.f32.partialorder %v622, 0.0
    %vm655 = vcmp.gt.f32.partialorder %v623, 0.0
    %vm656 = vcmp.gt.f32.partialorder %v624, 0.0
    %vm657 = vcmp.gt.f32.partialorder %v625, 0.0
    %vm658 = vcmp.gt.f32.partialorder %v626, 0.0
    %vm659 = vcmp.gt.f32.partialorder %v627, 0.0
    %vm660 = vcmp.gt.f32.partialorder %v628, 0.0
    %vm661 = vcmp.gt.f32.partialorder %v629, 0.0
    %vm662 = vcmp.gt.f32.partialorder %v630, 0.0
    %vm663 = vcmp.gt.f32.partialorder %v631, 0.0
    %vm664 = vcmp.gt.f32.partialorder %v632, 0.0
    %v665 = vmul.f32 %v601, 0.01
    %v666 = vmul.f32 %v602, 0.01
    %v667 = vmul.f32 %v603, 0.01
    %v668 = vmul.f32 %v604, 0.01
    %v669 = vmul.f32 %v605, 0.01
    %v670 = vmul.f32 %v606, 0.01
    %v671 = vmul.f32 %v607, 0.01
    %v672 = vmul.f32 %v608, 0.01
    %v673 = vmul.f32 %v609, 0.01
    %v674 = vmul.f32 %v610, 0.01
    %v675 = vmul.f32 %v611, 0.01
    %v676 = vmul.f32 %v612, 0.01
    %v677 = vmul.f32 %v613, 0.01
    %v678 = vmul.f32 %v614, 0.01
    %v679 = vmul.f32 %v615, 0.01
    %v680 = vmul.f32 %v616, 0.01
    %v681 = vmul.f32 %v617, 0.01
    %v682 = vmul.f32 %v618, 0.01
    %v683 = vmul.f32 %v619, 0.01
    %v684 = vmul.f32 %v620, 0.01
    %v685 = vmul.f32 %v621, 0.01
    %v686 = vmul.f32 %v622, 0.01
    %v687 = vmul.f32 %v623, 0.01
    %v688 = vmul.f32 %v624, 0.01
    %v689 = vmul.f32 %v625, 0.01
    %v690 = vmul.f32 %v626, 0.01
    %v691 = vmul.f32 %v627, 0.01
    %v692 = vmul.f32 %v628, 0.01
    %v693 = vmul.f32 %v629, 0.01
    %v694 = vmul.f32 %v630, 0.01
    %v695 = vmul.f32 %v631, 0.01
    %v696 = vmul.f32 %v632, 0.01
    %v697 = vsel %vm633, %v601, %v665
    %v698 = vsel %vm634, %v602, %v666
    %v699 = vsel %vm635, %v603, %v667
    %v700 = vsel %vm636, %v604, %v668
    %v701 = vsel %vm637, %v605, %v669
    %v702 = vsel %vm638, %v606, %v670
    %v703 = vsel %vm639, %v607, %v671
    %v704 = vsel %vm640, %v608, %v672
    %v705 = vsel %vm641, %v609, %v673
    %v706 = vsel %vm642, %v610, %v674
    %v707 = vsel %vm643, %v611, %v675
    %v708 = vsel %vm644, %v612, %v676
    %v709 = vsel %vm645, %v613, %v677
    %v710 = vsel %vm646, %v614, %v678
    %v711 = vsel %vm647, %v615, %v679
    %v712 = vsel %vm648, %v616, %v680
    %v713 = vsel %vm649, %v617, %v681
    %v714 = vsel %vm650, %v618, %v682
    %v715 = vsel %vm651, %v619, %v683
    %v716 = vsel %vm652, %v620, %v684
    %v717 = vsel %vm653, %v621, %v685
    %v718 = vsel %vm654, %v622, %v686
    %v719 = vsel %vm655, %v623, %v687
    %v720 = vsel %vm656, %v624, %v688
    %v721 = vsel %vm657, %v625, %v689
    %v722 = vsel %vm658, %v626, %v690
    %v723 = vsel %vm659, %v627, %v691
    %v724 = vsel %vm660, %v628, %v692
    %v725 = vsel %vm661, %v629, %v693
    %v726 = vsel %vm662, %v630, %v694
    %v727 = vsel %vm663, %v631, %v695
    %v728 = vsel %vm664, %v632, %v696
    %v729 = vpack.c.bf16 %v699, %v697
    %v730 = vpack.c.bf16 %v700, %v698
    %v731 = vpack.c.bf16 %v703, %v701
    %v732 = vpack.c.bf16 %v704, %v702
    %v733 = vpack.c.bf16 %v707, %v705
    %v734 = vpack.c.bf16 %v708, %v706
    %v735 = vpack.c.bf16 %v711, %v709
    %v736 = vpack.c.bf16 %v712, %v710
    %v737 = vpack.c.bf16 %v715, %v713
    %v738 = vpack.c.bf16 %v716, %v714
    %v739 = vpack.c.bf16 %v719, %v717
    %v740 = vpack.c.bf16 %v720, %v718
    %v741 = vpack.c.bf16 %v723, %v721
    %v742 = vpack.c.bf16 %v724, %v722
    %v743 = vpack.c.bf16 %v727, %v725
    %v744 = vpack.c.bf16 %v728, %v726
    %v745 = vld [vmem:[#allocation4] sm:$0xff]
    %v746 = vld [vmem:[#allocation4 + $0x8] sm:$0xff]
    %v747 = vld [vmem:[#allocation4 + $0x10] sm:$0xff]
    %v748 = vld [vmem:[#allocation4 + $0x18] sm:$0xff]
    %v749 = vld [vmem:[#allocation4 + $0x20] sm:$0xff]
    %v750 = vld [vmem:[#allocation4 + $0x28] sm:$0xff]
    %v751 = vld [vmem:[#allocation4 + $0x30] sm:$0xff]
    %v752 = vld [vmem:[#allocation4 + $0x38] sm:$0xff]
    %v753 = vld [vmem:[#allocation4 + $0x40] sm:$0xff]
    %v754 = vld [vmem:[#allocation4 + $0x48] sm:$0xff]
    %v755 = vld [vmem:[#allocation4 + $0x50] sm:$0xff]
    %v756 = vld [vmem:[#allocation4 + $0x58] sm:$0xff]
    %v757 = vld [vmem:[#allocation4 + $0x60] sm:$0xff]
    %v758 = vld [vmem:[#allocation4 + $0x68] sm:$0xff]
    %v759 = vld [vmem:[#allocation4 + $0x70] sm:$0xff]
    %v760 = vld [vmem:[#allocation4 + $0x78] sm:$0xff]
    %v761 = vld [vmem:[#allocation4 + $0x80] sm:$0xff]
    %v762 = vld [vmem:[#allocation4 + $0x88] sm:$0xff]
    %v763 = vld [vmem:[#allocation4 + $0x90] sm:$0xff]
    %v764 = vld [vmem:[#allocation4 + $0x98] sm:$0xff]
    %v765 = vld [vmem:[#allocation4 + $0xa0] sm:$0xff]
    %v766 = vld [vmem:[#allocation4 + $0xa8] sm:$0xff]
    %v767 = vld [vmem:[#allocation4 + $0xb0] sm:$0xff]
    %v768 = vld [vmem:[#allocation4 + $0xb8] sm:$0xff]
    %v769 = vld [vmem:[#allocation4 + $0xc0] sm:$0xff]
    %v770 = vld [vmem:[#allocation4 + $0xc8] sm:$0xff]
    %v771 = vld [vmem:[#allocation4 + $0xd0] sm:$0xff]
    %v772 = vld [vmem:[#allocation4 + $0xd8] sm:$0xff]
    %v773 = vld [vmem:[#allocation4 + $0xe0] sm:$0xff]
    %v774 = vld [vmem:[#allocation4 + $0xe8] sm:$0xff]
    %v775 = vld [vmem:[#allocation4 + $0xf0] sm:$0xff]
    %v776 = vld [vmem:[#allocation4 + $0xf8] sm:$0xff]
    %v809 = vunpack.c.l.b16 %v745
    %v810 = vunpack.c.h.b16 %v745
    %v811 = vunpack.c.l.b16 %v746
    %v812 = vunpack.c.h.b16 %v746
    %v813 = vunpack.c.l.b16 %v747
    %v814 = vunpack.c.h.b16 %v747
    %v815 = vunpack.c.l.b16 %v748
    %v816 = vunpack.c.h.b16 %v748
    %v817 = vunpack.c.l.b16 %v749
    %v818 = vunpack.c.h.b16 %v749
    %v819 = vunpack.c.l.b16 %v750
    %v820 = vunpack.c.h.b16 %v750
    %v821 = vunpack.c.l.b16 %v751
    %v822 = vunpack.c.h.b16 %v751
    %v823 = vunpack.c.l.b16 %v752
    %v824 = vunpack.c.h.b16 %v752
    %v825 = vunpack.c.l.b16 %v753
    %v826 = vunpack.c.h.b16 %v753
    %v827 = vunpack.c.l.b16 %v754
    %v828 = vunpack.c.h.b16 %v754
    %v829 = vunpack.c.l.b16 %v755
    %v830 = vunpack.c.h.b16 %v755
    %v831 = vunpack.c.l.b16 %v756
    %v832 = vunpack.c.h.b16 %v756
    %v833 = vunpack.c.l.b16 %v757
    %v834 = vunpack.c.h.b16 %v757
    %v835 = vunpack.c.l.b16 %v758
    %v836 = vunpack.c.h.b16 %v758
    %v837 = vunpack.c.l.b16 %v759
    %v838 = vunpack.c.h.b16 %v759
    %v839 = vunpack.c.l.b16 %v760
    %v840 = vunpack.c.h.b16 %v760
    %v841 = vunpack.c.l.b16 %v761
    %v842 = vunpack.c.h.b16 %v761
    %v843 = vunpack.c.l.b16 %v762
    %v844 = vunpack.c.h.b16 %v762
    %v845 = vunpack.c.l.b16 %v763
    %v846 = vunpack.c.h.b16 %v763
    %v847 = vunpack.c.l.b16 %v764
    %v848 = vunpack.c.h.b16 %v764
    %v849 = vunpack.c.l.b16 %v765
    %v850 = vunpack.c.h.b16 %v765
    %v851 = vunpack.c.l.b16 %v766
    %v852 = vunpack.c.h.b16 %v766
    %v853 = vunpack.c.l.b16 %v767
    %v854 = vunpack.c.h.b16 %v767
    %v855 = vunpack.c.l.b16 %v768
    %v856 = vunpack.c.h.b16 %v768
    %v857 = vunpack.c.l.b16 %v769
    %v858 = vunpack.c.h.b16 %v769
    %v859 = vunpack.c.l.b16 %v770
    %v860 = vunpack.c.h.b16 %v770
    %v861 = vunpack.c.l.b16 %v771
    %v862 = vunpack.c.h.b16 %v771
    %v863 = vunpack.c.l.b16 %v772
    %v864 = vunpack.c.h.b16 %v772
    %v865 = vunpack.c.l.b16 %v773
    %v866 = vunpack.c.h.b16 %v773
    %v867 = vunpack.c.l.b16 %v774
    %v868 = vunpack.c.h.b16 %v774
    %v869 = vunpack.c.l.b16 %v775
    %v870 = vunpack.c.h.b16 %v775
    %v871 = vunpack.c.l.b16 %v776
    %v872 = vunpack.c.h.b16 %v776
    %v873 = vpack.c.b16 %v811, %v809
    %v874 = vpack.c.b16 %v812, %v810
    %v875 = vpack.c.b16 %v815, %v813
    %v876 = vpack.c.b16 %v816, %v814
    %v877 = vpack.c.b16 %v819, %v817
    %v878 = vpack.c.b16 %v820, %v818
    %v879 = vpack.c.b16 %v823, %v821
    %v880 = vpack.c.b16 %v824, %v822
    %v881 = vpack.c.b16 %v827, %v825
    %v882 = vpack.c.b16 %v828, %v826
    %v883 = vpack.c.b16 %v831, %v829
    %v884 = vpack.c.b16 %v832, %v830
    %v885 = vpack.c.b16 %v835, %v833
    %v886 = vpack.c.b16 %v836, %v834
    %v887 = vpack.c.b16 %v839, %v837
    %v888 = vpack.c.b16 %v840, %v838
    %v889 = vpack.c.b16 %v843, %v841
    %v890 = vpack.c.b16 %v844, %v842
    %v891 = vpack.c.b16 %v847, %v845
    %v892 = vpack.c.b16 %v848, %v846
    %v893 = vpack.c.b16 %v851, %v849
    %v894 = vpack.c.b16 %v852, %v850
    %v895 = vpack.c.b16 %v855, %v853
    %v896 = vpack.c.b16 %v856, %v854
    %v897 = vpack.c.b16 %v859, %v857
    %v898 = vpack.c.b16 %v860, %v858
    %v899 = vpack.c.b16 %v863, %v861
    %v900 = vpack.c.b16 %v864, %v862
    %v901 = vpack.c.b16 %v867, %v865
    %v902 = vpack.c.b16 %v868, %v866
    %v903 = vpack.c.b16 %v871, %v869
    %v904 = vpack.c.b16 %v872, %v870
    %937 = vmatprep.subr.bf16.mxu0 %v874
    %938 = vmatpush1.bf16.msra.mxu0 %v873
    %939 = vmatprep.subr.bf16.mxu0 %v876
    %940 = vmatpush1.bf16.msra.mxu0 %v875
    %941 = vmatprep.subr.bf16.mxu0 %v878
    %942 = vmatpush1.bf16.msra.mxu0 %v877
    %943 = vmatprep.subr.bf16.mxu0 %v880
    %944 = vmatpush1.bf16.msra.mxu0 %v879
    %945 = vmatprep.subr.bf16.mxu0 %v882
    %946 = vmatpush1.bf16.msra.mxu0 %v881
    %947 = vmatprep.subr.bf16.mxu0 %v884
    %948 = vmatpush1.bf16.msra.mxu0 %v883
    %949 = vmatprep.subr.bf16.mxu0 %v886
    %950 = vmatpush1.bf16.msra.mxu0 %v885
    %951 = vmatprep.subr.bf16.mxu0 %v888
    %952 = vmatpush1.bf16.msra.mxu0 %v887
    %953 = vmatprep.subr.bf16.mxu0 %v890
    %954 = vmatpush1.bf16.msra.mxu0 %v889
    %955 = vmatprep.subr.bf16.mxu0 %v892
    %956 = vmatpush1.bf16.msra.mxu0 %v891
    %957 = vmatprep.subr.bf16.mxu0 %v894
    %958 = vmatpush1.bf16.msra.mxu0 %v893
    %959 = vmatprep.subr.bf16.mxu0 %v896
    %960 = vmatpush1.bf16.msra.mxu0 %v895
    %961 = vmatprep.subr.bf16.mxu0 %v898
    %962 = vmatpush1.bf16.msra.mxu0 %v897
    %963 = vmatprep.subr.bf16.mxu0 %v900
    %964 = vmatpush1.bf16.msra.mxu0 %v899
    %965 = vmatprep.subr.bf16.mxu0 %v902
    %966 = vmatpush1.bf16.msra.mxu0 %v901
    %967 = vmatprep.subr.bf16.mxu0 %v904
    %968 = vmatpush1.bf16.msra.mxu0 %v903
    %969 = vmatprep.mubr.bf16.mxu0 %v730
    %970 = vmatmul.mubr.bf16.gmra.mrb[0].mxu0 %v729
    %v971 = vpop.f32.mrb[0].mxu0
    %v972 = vadd.f32 0.0, %v971
    %v973 = vpop.f32.mrb[0].mxu0
    %v974 = vadd.f32 0.0, %v973
    %v975 = vpop.f32.mrb[0].mxu0
    %v976 = vadd.f32 0.0, %v975
    %v977 = vpop.f32.mrb[0].mxu0
    %v978 = vadd.f32 0.0, %v977
    %979 = vmatprep.mubr.bf16.mxu0 %v732
    %980 = vmatmul.mubr.bf16.gmra.mrb[0].mxu0 %v731
    %v981 = vpop.f32.mrb[0].mxu0
    %v982 = vadd.f32 0.0, %v981
    %v983 = vpop.f32.mrb[0].mxu0
    %v984 = vadd.f32 0.0, %v983
    %v985 = vpop.f32.mrb[0].mxu0
    %v986 = vadd.f32 0.0, %v985
    %v987 = vpop.f32.mrb[0].mxu0
    %v988 = vadd.f32 0.0, %v987
    %989 = vmatprep.mubr.bf16.mxu0 %v734
    %990 = vmatmul.mubr.bf16.gmra.mrb[0].mxu0 %v733
    %v991 = vpop.f32.mrb[0].mxu0
    %v992 = vadd.f32 0.0, %v991
    %v993 = vpop.f32.mrb[0].mxu0
    %v994 = vadd.f32 0.0, %v993
    %v995 = vpop.f32.mrb[0].mxu0
    %v996 = vadd.f32 0.0, %v995
    %v997 = vpop.f32.mrb[0].mxu0
    %v998 = vadd.f32 0.0, %v997
    %999 = vmatprep.mubr.bf16.mxu0 %v736
    %1000 = vmatmul.mubr.bf16.gmra.mrb[0].mxu0 %v735
    %v1001 = vpop.f32.mrb[0].mxu0
    %v1002 = vadd.f32 0.0, %v1001
    %v1003 = vpop.f32.mrb[0].mxu0
    %v1004 = vadd.f32 0.0, %v1003
    %v1005 = vpop.f32.mrb[0].mxu0
    %v1006 = vadd.f32 0.0, %v1005
    %v1007 = vpop.f32.mrb[0].mxu0
    %v1008 = vadd.f32 0.0, %v1007
    %1009 = vmatprep.mubr.bf16.mxu0 %v738
    %1010 = vmatmul.mubr.bf16.gmra.mrb[0].mxu0 %v737
    %v1011 = vpop.f32.mrb[0].mxu0
    %v1012 = vadd.f32 0.0, %v1011
    %v1013 = vpop.f32.mrb[0].mxu0
    %v1014 = vadd.f32 0.0, %v1013
    %v1015 = vpop.f32.mrb[0].mxu0
    %v1016 = vadd.f32 0.0, %v1015
    %v1017 = vpop.f32.mrb[0].mxu0
    %v1018 = vadd.f32 0.0, %v1017
    %1019 = vmatprep.mubr.bf16.mxu0 %v740
    %1020 = vmatmul.mubr.bf16.gmra.mrb[0].mxu0 %v739
    %v1021 = vpop.f32.mrb[0].mxu0
    %v1022 = vadd.f32 0.0, %v1021
    %v1023 = vpop.f32.mrb[0].mxu0
    %v1024 = vadd.f32 0.0, %v1023
    %v1025 = vpop.f32.mrb[0].mxu0
    %v1026 = vadd.f32 0.0, %v1025
    %v1027 = vpop.f32.mrb[0].mxu0
    %v1028 = vadd.f32 0.0, %v1027
    %1029 = vmatprep.mubr.bf16.mxu0 %v742
    %1030 = vmatmul.mubr.bf16.gmra.mrb[0].mxu0 %v741
    %v1031 = vpop.f32.mrb[0].mxu0
    %v1032 = vadd.f32 0.0, %v1031
    %v1033 = vpop.f32.mrb[0].mxu0
    %v1034 = vadd.f32 0.0, %v1033
    %v1035 = vpop.f32.mrb[0].mxu0
    %v1036 = vadd.f32 0.0, %v1035
    %v1037 = vpop.f32.mrb[0].mxu0
    %v1038 = vadd.f32 0.0, %v1037
    %1039 = vmatprep.mubr.bf16.mxu0 %v744
    %1040 = vmatmul.mubr.bf16.gmra.mrb[0].mxu0 %v743
    %v1041 = vpop.f32.mrb[0].mxu0
    %v1042 = vadd.f32 0.0, %v1041
    %v1043 = vpop.f32.mrb[0].mxu0
    %v1044 = vadd.f32 0.0, %v1043
    %v1045 = vpop.f32.mrb[0].mxu0
    %v1046 = vadd.f32 0.0, %v1045
    %v1047 = vpop.f32.mrb[0].mxu0
    %v1048 = vadd.f32 0.0, %v1047
    %1049 = vdwg.mxu0
    %v1050 = vadd.f32 %v511, %v972
    %v1051 = vadd.f32 %v513, %v974
    %v1052 = vadd.f32 %v515, %v976
    %v1053 = vadd.f32 %v517, %v978
    %v1054 = vadd.f32 %v521, %v982
    %v1055 = vadd.f32 %v523, %v984
    %v1056 = vadd.f32 %v525, %v986
    %v1057 = vadd.f32 %v527, %v988
    %v1058 = vadd.f32 %v531, %v992
    %v1059 = vadd.f32 %v533, %v994
    %v1060 = vadd.f32 %v535, %v996
    %v1061 = vadd.f32 %v537, %v998
    %v1062 = vadd.f32 %v541, %v1002
    %v1063 = vadd.f32 %v543, %v1004
    %v1064 = vadd.f32 %v545, %v1006
    %v1065 = vadd.f32 %v547, %v1008
    %v1066 = vadd.f32 %v551, %v1012
    %v1067 = vadd.f32 %v553, %v1014
    %v1068 = vadd.f32 %v555, %v1016
    %v1069 = vadd.f32 %v557, %v1018
    %v1070 = vadd.f32 %v561, %v1022
    %v1071 = vadd.f32 %v563, %v1024
    %v1072 = vadd.f32 %v565, %v1026
    %v1073 = vadd.f32 %v567, %v1028
    %v1074 = vadd.f32 %v571, %v1032
    %v1075 = vadd.f32 %v573, %v1034
    %v1076 = vadd.f32 %v575, %v1036
    %v1077 = vadd.f32 %v577, %v1038
    %v1078 = vadd.f32 %v581, %v1042
    %v1079 = vadd.f32 %v583, %v1044
    %v1080 = vadd.f32 %v585, %v1046
    %v1081 = vadd.f32 %v587, %v1048
    %v1082 = vld [vmem:[#allocation6] sm:$0x3]
    %v1084 = vlaneseq
    %v1085 = vshrl.u32 %v1084, 7
    %v1086 = vsub.s32 0, %v1085
    %v1087 = vrot.slane %v1082, %v1086
    %v1088 = vlaneseq
    %v1089 = vshrl.u32 %v1088, 7
    %v1090 = vsub.s32 1, %v1089
    %v1091 = vrot.slane %v1082, %v1090
    %v1094 = vadd.f32 %v1050, %v1087
    %v1095 = vadd.f32 %v1051, %v1091
    %v1096 = vadd.f32 %v1052, %v1087
    %v1097 = vadd.f32 %v1053, %v1091
    %v1098 = vadd.f32 %v1054, %v1087
    %v1099 = vadd.f32 %v1055, %v1091
    %v1100 = vadd.f32 %v1056, %v1087
    %v1101 = vadd.f32 %v1057, %v1091
    %v1102 = vadd.f32 %v1058, %v1087
    %v1103 = vadd.f32 %v1059, %v1091
    %v1104 = vadd.f32 %v1060, %v1087
    %v1105 = vadd.f32 %v1061, %v1091
    %v1106 = vadd.f32 %v1062, %v1087
    %v1107 = vadd.f32 %v1063, %v1091
    %v1108 = vadd.f32 %v1064, %v1087
    %v1109 = vadd.f32 %v1065, %v1091
    %v1110 = vadd.f32 %v1066, %v1087
    %v1111 = vadd.f32 %v1067, %v1091
    %v1112 = vadd.f32 %v1068, %v1087
    %v1113 = vadd.f32 %v1069, %v1091
    %v1114 = vadd.f32 %v1070, %v1087
    %v1115 = vadd.f32 %v1071, %v1091
    %v1116 = vadd.f32 %v1072, %v1087
    %v1117 = vadd.f32 %v1073, %v1091
    %v1118 = vadd.f32 %v1074, %v1087
    %v1119 = vadd.f32 %v1075, %v1091
    %v1120 = vadd.f32 %v1076, %v1087
    %v1121 = vadd.f32 %v1077, %v1091
    %v1122 = vadd.f32 %v1078, %v1087
    %v1123 = vadd.f32 %v1079, %v1091
    %v1124 = vadd.f32 %v1080, %v1087
    %v1125 = vadd.f32 %v1081, %v1091
    %vm1126 = vcmp.gt.f32.partialorder %v1094, 0.0
    %vm1127 = vcmp.gt.f32.partialorder %v1095, 0.0
    %vm1128 = vcmp.gt.f32.partialorder %v1096, 0.0
    %vm1129 = vcmp.gt.f32.partialorder %v1097, 0.0
    %vm1130 = vcmp.gt.f32.partialorder %v1098, 0.0
    %vm1131 = vcmp.gt.f32.partialorder %v1099, 0.0
    %vm1132 = vcmp.gt.f32.partialorder %v1100, 0.0
    %vm1133 = vcmp.gt.f32.partialorder %v1101, 0.0
    %vm1134 = vcmp.gt.f32.partialorder %v1102, 0.0
    %vm1135 = vcmp.gt.f32.partialorder %v1103, 0.0
    %vm1136 = vcmp.gt.f32.partialorder %v1104, 0.0
    %vm1137 = vcmp.gt.f32.partialorder %v1105, 0.0
    %vm1138 = vcmp.gt.f32.partialorder %v1106, 0.0
    %vm1139 = vcmp.gt.f32.partialorder %v1107, 0.0
    %vm1140 = vcmp.gt.f32.partialorder %v1108, 0.0
    %vm1141 = vcmp.gt.f32.partialorder %v1109, 0.0
    %vm1142 = vcmp.gt.f32.partialorder %v1110, 0.0
    %vm1143 = vcmp.gt.f32.partialorder %v1111, 0.0
    %vm1144 = vcmp.gt.f32.partialorder %v1112, 0.0
    %vm1145 = vcmp.gt.f32.partialorder %v1113, 0.0
    %vm1146 = vcmp.gt.f32.partialorder %v1114, 0.0
    %vm1147 = vcmp.gt.f32.partialorder %v1115, 0.0
    %vm1148 = vcmp.gt.f32.partialorder %v1116, 0.0
    %vm1149 = vcmp.gt.f32.partialorder %v1117, 0.0
    %vm1150 = vcmp.gt.f32.partialorder %v1118, 0.0
    %vm1151 = vcmp.gt.f32.partialorder %v1119, 0.0
    %vm1152 = vcmp.gt.f32.partialorder %v1120, 0.0
    %vm1153 = vcmp.gt.f32.partialorder %v1121, 0.0
    %vm1154 = vcmp.gt.f32.partialorder %v1122, 0.0
    %vm1155 = vcmp.gt.f32.partialorder %v1123, 0.0
    %vm1156 = vcmp.gt.f32.partialorder %v1124, 0.0
    %vm1157 = vcmp.gt.f32.partialorder %v1125, 0.0
    %v1158 = vmul.f32 %v1094, 0.01
    %v1159 = vmul.f32 %v1095, 0.01
    %v1160 = vmul.f32 %v1096, 0.01
    %v1161 = vmul.f32 %v1097, 0.01
    %v1162 = vmul.f32 %v1098, 0.01
    %v1163 = vmul.f32 %v1099, 0.01
    %v1164 = vmul.f32 %v1100, 0.01
    %v1165 = vmul.f32 %v1101, 0.01
    %v1166 = vmul.f32 %v1102, 0.01
    %v1167 = vmul.f32 %v1103, 0.01
    %v1168 = vmul.f32 %v1104, 0.01
    %v1169 = vmul.f32 %v1105, 0.01
    %v1170 = vmul.f32 %v1106, 0.01
    %v1171 = vmul.f32 %v1107, 0.01
    %v1172 = vmul.f32 %v1108, 0.01
    %v1173 = vmul.f32 %v1109, 0.01
    %v1174 = vmul.f32 %v1110, 0.01
    %v1175 = vmul.f32 %v1111, 0.01
    %v1176 = vmul.f32 %v1112, 0.01
    %v1177 = vmul.f32 %v1113, 0.01
    %v1178 = vmul.f32 %v1114, 0.01
    %v1179 = vmul.f32 %v1115, 0.01
    %v1180 = vmul.f32 %v1116, 0.01
    %v1181 = vmul.f32 %v1117, 0.01
    %v1182 = vmul.f32 %v1118, 0.01
    %v1183 = vmul.f32 %v1119, 0.01
    %v1184 = vmul.f32 %v1120, 0.01
    %v1185 = vmul.f32 %v1121, 0.01
    %v1186 = vmul.f32 %v1122, 0.01
    %v1187 = vmul.f32 %v1123, 0.01
    %v1188 = vmul.f32 %v1124, 0.01
    %v1189 = vmul.f32 %v1125, 0.01
    %v1190 = vsel %vm1126, %v1094, %v1158
    %v1191 = vsel %vm1127, %v1095, %v1159
    %v1192 = vsel %vm1128, %v1096, %v1160
    %v1193 = vsel %vm1129, %v1097, %v1161
    %v1194 = vsel %vm1130, %v1098, %v1162
    %v1195 = vsel %vm1131, %v1099, %v1163
    %v1196 = vsel %vm1132, %v1100, %v1164
    %v1197 = vsel %vm1133, %v1101, %v1165
    %v1198 = vsel %vm1134, %v1102, %v1166
    %v1199 = vsel %vm1135, %v1103, %v1167
    %v1200 = vsel %vm1136, %v1104, %v1168
    %v1201 = vsel %vm1137, %v1105, %v1169
    %v1202 = vsel %vm1138, %v1106, %v1170
    %v1203 = vsel %vm1139, %v1107, %v1171
    %v1204 = vsel %vm1140, %v1108, %v1172
    %v1205 = vsel %vm1141, %v1109, %v1173
    %v1206 = vsel %vm1142, %v1110, %v1174
    %v1207 = vsel %vm1143, %v1111, %v1175
    %v1208 = vsel %vm1144, %v1112, %v1176
    %v1209 = vsel %vm1145, %v1113, %v1177
    %v1210 = vsel %vm1146, %v1114, %v1178
    %v1211 = vsel %vm1147, %v1115, %v1179
    %v1212 = vsel %vm1148, %v1116, %v1180
    %v1213 = vsel %vm1149, %v1117, %v1181
    %v1214 = vsel %vm1150, %v1118, %v1182
    %v1215 = vsel %vm1151, %v1119, %v1183
    %v1216 = vsel %vm1152, %v1120, %v1184
    %v1217 = vsel %vm1153, %v1121, %v1185
    %v1218 = vsel %vm1154, %v1122, %v1186
    %v1219 = vsel %vm1155, %v1123, %v1187
    %v1220 = vsel %vm1156, %v1124, %v1188
    %v1221 = vsel %vm1157, %v1125, %v1189
    %v1222 = vpack.c.bf16 %v1192, %v1190
    %v1223 = vpack.c.bf16 %v1193, %v1191
    %v1224 = vpack.c.bf16 %v1196, %v1194
    %v1225 = vpack.c.bf16 %v1197, %v1195
    %v1226 = vpack.c.bf16 %v1200, %v1198
    %v1227 = vpack.c.bf16 %v1201, %v1199
    %v1228 = vpack.c.bf16 %v1204, %v1202
    %v1229 = vpack.c.bf16 %v1205, %v1203
    %v1230 = vpack.c.bf16 %v1208, %v1206
    %v1231 = vpack.c.bf16 %v1209, %v1207
    %v1232 = vpack.c.bf16 %v1212, %v1210
    %v1233 = vpack.c.bf16 %v1213, %v1211
    %v1234 = vpack.c.bf16 %v1216, %v1214
    %v1235 = vpack.c.bf16 %v1217, %v1215
    %v1236 = vpack.c.bf16 %v1220, %v1218
    %v1237 = vpack.c.bf16 %v1221, %v1219
    %v1238 = vld [vmem:[#allocation7] sm:$0xff]
    %v1239 = vld [vmem:[#allocation7 + $0x8] sm:$0xff]
    %v1240 = vld [vmem:[#allocation7 + $0x10] sm:$0xff]
    %v1241 = vld [vmem:[#allocation7 + $0x18] sm:$0xff]
    %v1242 = vld [vmem:[#allocation7 + $0x20] sm:$0xff]
    %v1243 = vld [vmem:[#allocation7 + $0x28] sm:$0xff]
    %v1244 = vld [vmem:[#allocation7 + $0x30] sm:$0xff]
    %v1245 = vld [vmem:[#allocation7 + $0x38] sm:$0xff]
    %v1246 = vld [vmem:[#allocation7 + $0x40] sm:$0xff]
    %v1247 = vld [vmem:[#allocation7 + $0x48] sm:$0xff]
    %v1248 = vld [vmem:[#allocation7 + $0x50] sm:$0xff]
    %v1249 = vld [vmem:[#allocation7 + $0x58] sm:$0xff]
    %v1250 = vld [vmem:[#allocation7 + $0x60] sm:$0xff]
    %v1251 = vld [vmem:[#allocation7 + $0x68] sm:$0xff]
    %v1252 = vld [vmem:[#allocation7 + $0x70] sm:$0xff]
    %v1253 = vld [vmem:[#allocation7 + $0x78] sm:$0xff]
    %v1254 = vld [vmem:[#allocation7 + $0x80] sm:$0xff]
    %v1255 = vld [vmem:[#allocation7 + $0x88] sm:$0xff]
    %v1256 = vld [vmem:[#allocation7 + $0x90] sm:$0xff]
    %v1257 = vld [vmem:[#allocation7 + $0x98] sm:$0xff]
    %v1258 = vld [vmem:[#allocation7 + $0xa0] sm:$0xff]
    %v1259 = vld [vmem:[#allocation7 + $0xa8] sm:$0xff]
    %v1260 = vld [vmem:[#allocation7 + $0xb0] sm:$0xff]
    %v1261 = vld [vmem:[#allocation7 + $0xb8] sm:$0xff]
    %v1262 = vld [vmem:[#allocation7 + $0xc0] sm:$0xff]
    %v1263 = vld [vmem:[#allocation7 + $0xc8] sm:$0xff]
    %v1264 = vld [vmem:[#allocation7 + $0xd0] sm:$0xff]
    %v1265 = vld [vmem:[#allocation7 + $0xd8] sm:$0xff]
    %v1266 = vld [vmem:[#allocation7 + $0xe0] sm:$0xff]
    %v1267 = vld [vmem:[#allocation7 + $0xe8] sm:$0xff]
    %v1268 = vld [vmem:[#allocation7 + $0xf0] sm:$0xff]
    %v1269 = vld [vmem:[#allocation7 + $0xf8] sm:$0xff]
    %v1270 = vld [vmem:[#allocation9] sm:$0x3]
    %v1272 = vlaneseq
    %v1273 = vshrl.u32 %v1272, 7
    %v1274 = vsub.s32 0, %v1273
    %v1275 = vrot.slane %v1270, %v1274
    %v1276 = vlaneseq
    %v1277 = vshrl.u32 %v1276, 7
    %v1278 = vsub.s32 1, %v1277
    %v1279 = vrot.slane %v1270, %v1278
    %v1314 = vunpack.c.l.b16 %v1238
    %v1315 = vunpack.c.h.b16 %v1238
    %v1316 = vunpack.c.l.b16 %v1239
    %v1317 = vunpack.c.h.b16 %v1239
    %v1318 = vunpack.c.l.b16 %v1240
    %v1319 = vunpack.c.h.b16 %v1240
    %v1320 = vunpack.c.l.b16 %v1241
    %v1321 = vunpack.c.h.b16 %v1241
    %v1322 = vunpack.c.l.b16 %v1242
    %v1323 = vunpack.c.h.b16 %v1242
    %v1324 = vunpack.c.l.b16 %v1243
    %v1325 = vunpack.c.h.b16 %v1243
    %v1326 = vunpack.c.l.b16 %v1244
    %v1327 = vunpack.c.h.b16 %v1244
    %v1328 = vunpack.c.l.b16 %v1245
    %v1329 = vunpack.c.h.b16 %v1245
    %v1330 = vunpack.c.l.b16 %v1246
    %v1331 = vunpack.c.h.b16 %v1246
    %v1332 = vunpack.c.l.b16 %v1247
    %v1333 = vunpack.c.h.b16 %v1247
    %v1334 = vunpack.c.l.b16 %v1248
    %v1335 = vunpack.c.h.b16 %v1248
    %v1336 = vunpack.c.l.b16 %v1249
    %v1337 = vunpack.c.h.b16 %v1249
    %v1338 = vunpack.c.l.b16 %v1250
    %v1339 = vunpack.c.h.b16 %v1250
    %v1340 = vunpack.c.l.b16 %v1251
    %v1341 = vunpack.c.h.b16 %v1251
    %v1342 = vunpack.c.l.b16 %v1252
    %v1343 = vunpack.c.h.b16 %v1252
    %v1344 = vunpack.c.l.b16 %v1253
    %v1345 = vunpack.c.h.b16 %v1253
    %v1346 = vunpack.c.l.b16 %v1254
    %v1347 = vunpack.c.h.b16 %v1254
    %v1348 = vunpack.c.l.b16 %v1255
    %v1349 = vunpack.c.h.b16 %v1255
    %v1350 = vunpack.c.l.b16 %v1256
    %v1351 = vunpack.c.h.b16 %v1256
    %v1352 = vunpack.c.l.b16 %v1257
    %v1353 = vunpack.c.h.b16 %v1257
    %v1354 = vunpack.c.l.b16 %v1258
    %v1355 = vunpack.c.h.b16 %v1258
    %v1356 = vunpack.c.l.b16 %v1259
    %v1357 = vunpack.c.h.b16 %v1259
    %v1358 = vunpack.c.l.b16 %v1260
    %v1359 = vunpack.c.h.b16 %v1260
    %v1360 = vunpack.c.l.b16 %v1261
    %v1361 = vunpack.c.h.b16 %v1261
    %v1362 = vunpack.c.l.b16 %v1262
    %v1363 = vunpack.c.h.b16 %v1262
    %v1364 = vunpack.c.l.b16 %v1263
    %v1365 = vunpack.c.h.b16 %v1263
    %v1366 = vunpack.c.l.b16 %v1264
    %v1367 = vunpack.c.h.b16 %v1264
    %v1368 = vunpack.c.l.b16 %v1265
    %v1369 = vunpack.c.h.b16 %v1265
    %v1370 = vunpack.c.l.b16 %v1266
    %v1371 = vunpack.c.h.b16 %v1266
    %v1372 = vunpack.c.l.b16 %v1267
    %v1373 = vunpack.c.h.b16 %v1267
    %v1374 = vunpack.c.l.b16 %v1268
    %v1375 = vunpack.c.h.b16 %v1268
    %v1376 = vunpack.c.l.b16 %v1269
    %v1377 = vunpack.c.h.b16 %v1269
    %v1378 = vpack.c.b16 %v1316, %v1314
    %v1379 = vpack.c.b16 %v1317, %v1315
    %v1380 = vpack.c.b16 %v1320, %v1318
    %v1381 = vpack.c.b16 %v1321, %v1319
    %v1382 = vpack.c.b16 %v1324, %v1322
    %v1383 = vpack.c.b16 %v1325, %v1323
    %v1384 = vpack.c.b16 %v1328, %v1326
    %v1385 = vpack.c.b16 %v1329, %v1327
    %v1386 = vpack.c.b16 %v1332, %v1330
    %v1387 = vpack.c.b16 %v1333, %v1331
    %v1388 = vpack.c.b16 %v1336, %v1334
    %v1389 = vpack.c.b16 %v1337, %v1335
    %v1390 = vpack.c.b16 %v1340, %v1338
    %v1391 = vpack.c.b16 %v1341, %v1339
    %v1392 = vpack.c.b16 %v1344, %v1342
    %v1393 = vpack.c.b16 %v1345, %v1343
    %v1394 = vpack.c.b16 %v1348, %v1346
    %v1395 = vpack.c.b16 %v1349, %v1347
    %v1396 = vpack.c.b16 %v1352, %v1350
    %v1397 = vpack.c.b16 %v1353, %v1351
    %v1398 = vpack.c.b16 %v1356, %v1354
    %v1399 = vpack.c.b16 %v1357, %v1355
    %v1400 = vpack.c.b16 %v1360, %v1358
    %v1401 = vpack.c.b16 %v1361, %v1359
    %v1402 = vpack.c.b16 %v1364, %v1362
    %v1403 = vpack.c.b16 %v1365, %v1363
    %v1404 = vpack.c.b16 %v1368, %v1366
    %v1405 = vpack.c.b16 %v1369, %v1367
    %v1406 = vpack.c.b16 %v1372, %v1370
    %v1407 = vpack.c.b16 %v1373, %v1371
    %v1408 = vpack.c.b16 %v1376, %v1374
    %v1409 = vpack.c.b16 %v1377, %v1375
    %1442 = vmatprep.subr.bf16.mxu0 %v1379
    %1443 = vmatpush1.bf16.msra.mxu0 %v1378
    %1444 = vmatprep.subr.bf16.mxu0 %v1381
    %1445 = vmatpush1.bf16.msra.mxu0 %v1380
    %1446 = vmatprep.subr.bf16.mxu0 %v1383
    %1447 = vmatpush1.bf16.msra.mxu0 %v1382
    %1448 = vmatprep.subr.bf16.mxu0 %v1385
    %1449 = vmatpush1.bf16.msra.mxu0 %v1384
    %1450 = vmatprep.subr.bf16.mxu0 %v1387
    %1451 = vmatpush1.bf16.msra.mxu0 %v1386
    %1452 = vmatprep.subr.bf16.mxu0 %v1389
    %1453 = vmatpush1.bf16.msra.mxu0 %v1388
    %1454 = vmatprep.subr.bf16.mxu0 %v1391
    %1455 = vmatpush1.bf16.msra.mxu0 %v1390
    %1456 = vmatprep.subr.bf16.mxu0 %v1393
    %1457 = vmatpush1.bf16.msra.mxu0 %v1392
    %1458 = vmatprep.subr.bf16.mxu0 %v1395
    %1459 = vmatpush1.bf16.msra.mxu0 %v1394
    %1460 = vmatprep.subr.bf16.mxu0 %v1397
    %1461 = vmatpush1.bf16.msra.mxu0 %v1396
    %1462 = vmatprep.subr.bf16.mxu0 %v1399
    %1463 = vmatpush1.bf16.msra.mxu0 %v1398
    %1464 = vmatprep.subr.bf16.mxu0 %v1401
    %1465 = vmatpush1.bf16.msra.mxu0 %v1400
    %1466 = vmatprep.subr.bf16.mxu0 %v1403
    %1467 = vmatpush1.bf16.msra.mxu0 %v1402
    %1468 = vmatprep.subr.bf16.mxu0 %v1405
    %1469 = vmatpush1.bf16.msra.mxu0 %v1404
    %1470 = vmatprep.subr.bf16.mxu0 %v1407
    %1471 = vmatpush1.bf16.msra.mxu0 %v1406
    %1472 = vmatprep.subr.bf16.mxu0 %v1409
    %1473 = vmatpush1.bf16.msra.mxu0 %v1408
    %1474 = vmatprep.mubr.bf16.mxu0 %v1223
    %1475 = vmatmul.mubr.bf16.gmra.mrb[0].mxu0 %v1222
    %v1476 = vpop.f32.mrb[0].mxu0
    %v1477 = vadd.f32 %v1275, %v1476
    %v1478 = vpop.f32.mrb[0].mxu0
    %v1479 = vadd.f32 %v1279, %v1478
    %v1480 = vpop.f32.mrb[0].mxu0
    %v1481 = vadd.f32 %v1275, %v1480
    %v1482 = vpop.f32.mrb[0].mxu0
    %v1483 = vadd.f32 %v1279, %v1482
    %1484 = vmatprep.mubr.bf16.mxu0 %v1225
    %1485 = vmatmul.mubr.bf16.gmra.mrb[0].mxu0 %v1224
    %v1486 = vpop.f32.mrb[0].mxu0
    %v1487 = vadd.f32 %v1275, %v1486
    %v1488 = vpop.f32.mrb[0].mxu0
    %v1489 = vadd.f32 %v1279, %v1488
    %v1490 = vpop.f32.mrb[0].mxu0
    %v1491 = vadd.f32 %v1275, %v1490
    %v1492 = vpop.f32.mrb[0].mxu0
    %v1493 = vadd.f32 %v1279, %v1492
    %1494 = vmatprep.mubr.bf16.mxu0 %v1227
    %1495 = vmatmul.mubr.bf16.gmra.mrb[0].mxu0 %v1226
    %v1496 = vpop.f32.mrb[0].mxu0
    %v1497 = vadd.f32 %v1275, %v1496
    %v1498 = vpop.f32.mrb[0].mxu0
    %v1499 = vadd.f32 %v1279, %v1498
    %v1500 = vpop.f32.mrb[0].mxu0
    %v1501 = vadd.f32 %v1275, %v1500
    %v1502 = vpop.f32.mrb[0].mxu0
    %v1503 = vadd.f32 %v1279, %v1502
    %1504 = vmatprep.mubr.bf16.mxu0 %v1229
    %1505 = vmatmul.mubr.bf16.gmra.mrb[0].mxu0 %v1228
    %v1506 = vpop.f32.mrb[0].mxu0
    %v1507 = vadd.f32 %v1275, %v1506
    %v1508 = vpop.f32.mrb[0].mxu0
    %v1509 = vadd.f32 %v1279, %v1508
    %v1510 = vpop.f32.mrb[0].mxu0
    %v1511 = vadd.f32 %v1275, %v1510
    %v1512 = vpop.f32.mrb[0].mxu0
    %v1513 = vadd.f32 %v1279, %v1512
    %1514 = vmatprep.mubr.bf16.mxu0 %v1231
    %1515 = vmatmul.mubr.bf16.gmra.mrb[0].mxu0 %v1230
    %v1516 = vpop.f32.mrb[0].mxu0
    %v1517 = vadd.f32 %v1275, %v1516
    %v1518 = vpop.f32.mrb[0].mxu0
    %v1519 = vadd.f32 %v1279, %v1518
    %v1520 = vpop.f32.mrb[0].mxu0
    %v1521 = vadd.f32 %v1275, %v1520
    %v1522 = vpop.f32.mrb[0].mxu0
    %v1523 = vadd.f32 %v1279, %v1522
    %1524 = vmatprep.mubr.bf16.mxu0 %v1233
    %1525 = vmatmul.mubr.bf16.gmra.mrb[0].mxu0 %v1232
    %v1526 = vpop.f32.mrb[0].mxu0
    %v1527 = vadd.f32 %v1275, %v1526
    %v1528 = vpop.f32.mrb[0].mxu0
    %v1529 = vadd.f32 %v1279, %v1528
    %v1530 = vpop.f32.mrb[0].mxu0
    %v1531 = vadd.f32 %v1275, %v1530
    %v1532 = vpop.f32.mrb[0].mxu0
    %v1533 = vadd.f32 %v1279, %v1532
    %1534 = vmatprep.mubr.bf16.mxu0 %v1235
    %1535 = vmatmul.mubr.bf16.gmra.mrb[0].mxu0 %v1234
    %v1536 = vpop.f32.mrb[0].mxu0
    %v1537 = vadd.f32 %v1275, %v1536
    %v1538 = vpop.f32.mrb[0].mxu0
    %v1539 = vadd.f32 %v1279, %v1538
    %v1540 = vpop.f32.mrb[0].mxu0
    %v1541 = vadd.f32 %v1275, %v1540
    %v1542 = vpop.f32.mrb[0].mxu0
    %v1543 = vadd.f32 %v1279, %v1542
    %1544 = vmatprep.mubr.bf16.mxu0 %v1237
    %1545 = vmatmul.mubr.bf16.gmra.mrb[0].mxu0 %v1236
    %v1546 = vpop.f32.mrb[0].mxu0
    %v1547 = vadd.f32 %v1275, %v1546
    %v1548 = vpop.f32.mrb[0].mxu0
    %v1549 = vadd.f32 %v1279, %v1548
    %v1550 = vpop.f32.mrb[0].mxu0
    %v1551 = vadd.f32 %v1275, %v1550
    %v1552 = vpop.f32.mrb[0].mxu0
    %v1553 = vadd.f32 %v1279, %v1552
    %1554 = vdwg.mxu0
    %vm1555 = vcmp.gt.f32.partialorder %v1477, 0.0
    %vm1556 = vcmp.gt.f32.partialorder %v1479, 0.0
    %vm1557 = vcmp.gt.f32.partialorder %v1481, 0.0
    %vm1558 = vcmp.gt.f32.partialorder %v1483, 0.0
    %vm1559 = vcmp.gt.f32.partialorder %v1487, 0.0
    %vm1560 = vcmp.gt.f32.partialorder %v1489, 0.0
    %vm1561 = vcmp.gt.f32.partialorder %v1491, 0.0
    %vm1562 = vcmp.gt.f32.partialorder %v1493, 0.0
    %vm1563 = vcmp.gt.f32.partialorder %v1497, 0.0
    %vm1564 = vcmp.gt.f32.partialorder %v1499, 0.0
    %vm1565 = vcmp.gt.f32.partialorder %v1501, 0.0
    %vm1566 = vcmp.gt.f32.partialorder %v1503, 0.0
    %vm1567 = vcmp.gt.f32.partialorder %v1507, 0.0
    %vm1568 = vcmp.gt.f32.partialorder %v1509, 0.0
    %vm1569 = vcmp.gt.f32.partialorder %v1511, 0.0
    %vm1570 = vcmp.gt.f32.partialorder %v1513, 0.0
    %vm1571 = vcmp.gt.f32.partialorder %v1517, 0.0
    %vm1572 = vcmp.gt.f32.partialorder %v1519, 0.0
    %vm1573 = vcmp.gt.f32.partialorder %v1521, 0.0
    %vm1574 = vcmp.gt.f32.partialorder %v1523, 0.0
    %vm1575 = vcmp.gt.f32.partialorder %v1527, 0.0
    %vm1576 = vcmp.gt.f32.partialorder %v1529, 0.0
    %vm1577 = vcmp.gt.f32.partialorder %v1531, 0.0
    %vm1578 = vcmp.gt.f32.partialorder %v1533, 0.0
    %vm1579 = vcmp.gt.f32.partialorder %v1537, 0.0
    %vm1580 = vcmp.gt.f32.partialorder %v1539, 0.0
    %vm1581 = vcmp.gt.f32.partialorder %v1541, 0.0
    %vm1582 = vcmp.gt.f32.partialorder %v1543, 0.0
    %vm1583 = vcmp.gt.f32.partialorder %v1547, 0.0
    %vm1584 = vcmp.gt.f32.partialorder %v1549, 0.0
    %vm1585 = vcmp.gt.f32.partialorder %v1551, 0.0
    %vm1586 = vcmp.gt.f32.partialorder %v1553, 0.0
    %v1587 = vmul.f32 %v1477, 0.01
    %v1588 = vmul.f32 %v1479, 0.01
    %v1589 = vmul.f32 %v1481, 0.01
    %v1590 = vmul.f32 %v1483, 0.01
    %v1591 = vmul.f32 %v1487, 0.01
    %v1592 = vmul.f32 %v1489, 0.01
    %v1593 = vmul.f32 %v1491, 0.01
    %v1594 = vmul.f32 %v1493, 0.01
    %v1595 = vmul.f32 %v1497, 0.01
    %v1596 = vmul.f32 %v1499, 0.01
    %v1597 = vmul.f32 %v1501, 0.01
    %v1598 = vmul.f32 %v1503, 0.01
    %v1599 = vmul.f32 %v1507, 0.01
    %v1600 = vmul.f32 %v1509, 0.01
    %v1601 = vmul.f32 %v1511, 0.01
    %v1602 = vmul.f32 %v1513, 0.01
    %v1603 = vmul.f32 %v1517, 0.01
    %v1604 = vmul.f32 %v1519, 0.01
    %v1605 = vmul.f32 %v1521, 0.01
    %v1606 = vmul.f32 %v1523, 0.01
    %v1607 = vmul.f32 %v1527, 0.01
    %v1608 = vmul.f32 %v1529, 0.01
    %v1609 = vmul.f32 %v1531, 0.01
    %v1610 = vmul.f32 %v1533, 0.01
    %v1611 = vmul.f32 %v1537, 0.01
    %v1612 = vmul.f32 %v1539, 0.01
    %v1613 = vmul.f32 %v1541, 0.01
    %v1614 = vmul.f32 %v1543, 0.01
    %v1615 = vmul.f32 %v1547, 0.01
    %v1616 = vmul.f32 %v1549, 0.01
    %v1617 = vmul.f32 %v1551, 0.01
    %v1618 = vmul.f32 %v1553, 0.01
    %v1619 = vsel %vm1555, %v1477, %v1587
    %v1620 = vsel %vm1556, %v1479, %v1588
    %v1621 = vsel %vm1557, %v1481, %v1589
    %v1622 = vsel %vm1558, %v1483, %v1590
    %v1623 = vsel %vm1559, %v1487, %v1591
    %v1624 = vsel %vm1560, %v1489, %v1592
    %v1625 = vsel %vm1561, %v1491, %v1593
    %v1626 = vsel %vm1562, %v1493, %v1594
    %v1627 = vsel %vm1563, %v1497, %v1595
    %v1628 = vsel %vm1564, %v1499, %v1596
    %v1629 = vsel %vm1565, %v1501, %v1597
    %v1630 = vsel %vm1566, %v1503, %v1598
    %v1631 = vsel %vm1567, %v1507, %v1599
    %v1632 = vsel %vm1568, %v1509, %v1600
    %v1633 = vsel %vm1569, %v1511, %v1601
    %v1634 = vsel %vm1570, %v1513, %v1602
    %v1635 = vsel %vm1571, %v1517, %v1603
    %v1636 = vsel %vm1572, %v1519, %v1604
    %v1637 = vsel %vm1573, %v1521, %v1605
    %v1638 = vsel %vm1574, %v1523, %v1606
    %v1639 = vsel %vm1575, %v1527, %v1607
    %v1640 = vsel %vm1576, %v1529, %v1608
    %v1641 = vsel %vm1577, %v1531, %v1609
    %v1642 = vsel %vm1578, %v1533, %v1610
    %v1643 = vsel %vm1579, %v1537, %v1611
    %v1644 = vsel %vm1580, %v1539, %v1612
    %v1645 = vsel %vm1581, %v1541, %v1613
    %v1646 = vsel %vm1582, %v1543, %v1614
    %v1647 = vsel %vm1583, %v1547, %v1615
    %v1648 = vsel %vm1584, %v1549, %v1616
    %v1649 = vsel %vm1585, %v1551, %v1617
    %v1650 = vsel %vm1586, %v1553, %v1618
    %v1651 = vpack.c.bf16 %v1621, %v1619
    %v1652 = vpack.c.bf16 %v1622, %v1620
    %v1653 = vpack.c.bf16 %v1625, %v1623
    %v1654 = vpack.c.bf16 %v1626, %v1624
    %v1655 = vpack.c.bf16 %v1629, %v1627
    %v1656 = vpack.c.bf16 %v1630, %v1628
    %v1657 = vpack.c.bf16 %v1633, %v1631
    %v1658 = vpack.c.bf16 %v1634, %v1632
    %v1659 = vpack.c.bf16 %v1637, %v1635
    %v1660 = vpack.c.bf16 %v1638, %v1636
    %v1661 = vpack.c.bf16 %v1641, %v1639
    %v1662 = vpack.c.bf16 %v1642, %v1640
    %v1663 = vpack.c.bf16 %v1645, %v1643
    %v1664 = vpack.c.bf16 %v1646, %v1644
    %v1665 = vpack.c.bf16 %v1649, %v1647
    %v1666 = vpack.c.bf16 %v1650, %v1648
    %v1667 = vld [vmem:[%s7] sm:$0xf]
    %v1668 = vld [vmem:[%s7 + $0x4] sm:$0xf]
    %v1669 = vld [vmem:[%s7 + $0x8] sm:$0xf]
    %v1670 = vld [vmem:[%s7 + $0xc] sm:$0xf]
    %v1671 = vld [vmem:[%s7 + $0x10] sm:$0xf]
    %v1672 = vld [vmem:[%s7 + $0x14] sm:$0xf]
    %v1673 = vld [vmem:[%s7 + $0x18] sm:$0xf]
    %v1674 = vld [vmem:[%s7 + $0x1c] sm:$0xf]
    %v1675 = vld [vmem:[%s7 + $0x20] sm:$0xf]
    %v1676 = vld [vmem:[%s7 + $0x24] sm:$0xf]
    %v1677 = vld [vmem:[%s7 + $0x28] sm:$0xf]
    %v1678 = vld [vmem:[%s7 + $0x2c] sm:$0xf]
    %v1679 = vld [vmem:[%s7 + $0x30] sm:$0xf]
    %v1680 = vld [vmem:[%s7 + $0x34] sm:$0xf]
    %v1681 = vld [vmem:[%s7 + $0x38] sm:$0xf]
    %v1682 = vld [vmem:[%s7 + $0x3c] sm:$0xf]
    %v1683 = vld [vmem:[%s7 + $0x40] sm:$0xf]
    %v1684 = vld [vmem:[%s7 + $0x44] sm:$0xf]
    %v1685 = vld [vmem:[%s7 + $0x48] sm:$0xf]
    %v1686 = vld [vmem:[%s7 + $0x4c] sm:$0xf]
    %v1687 = vld [vmem:[%s7 + $0x50] sm:$0xf]
    %v1688 = vld [vmem:[%s7 + $0x54] sm:$0xf]
    %v1689 = vld [vmem:[%s7 + $0x58] sm:$0xf]
    %v1690 = vld [vmem:[%s7 + $0x5c] sm:$0xf]
    %v1691 = vld [vmem:[%s7 + $0x60] sm:$0xf]
    %v1692 = vld [vmem:[%s7 + $0x64] sm:$0xf]
    %v1693 = vld [vmem:[%s7 + $0x68] sm:$0xf]
    %v1694 = vld [vmem:[%s7 + $0x6c] sm:$0xf]
    %v1695 = vld [vmem:[%s7 + $0x70] sm:$0xf]
    %v1696 = vld [vmem:[%s7 + $0x74] sm:$0xf]
    %v1697 = vld [vmem:[%s7 + $0x78] sm:$0xf]
    %v1698 = vld [vmem:[%s7 + $0x7c] sm:$0xf]
    %v1699 = vld [vmem:[#allocation10] sm:$0x1]
    %v1701 = vlaneseq
    %v1702 = vshrl.u32 %v1701, 7
    %v1703 = vsub.s32 0, %v1702
    %v1704 = vrot.slane %v1699, %v1703
    %v1738 = vunpack.c.l.b16 %v1667
    %v1739 = vunpack.c.l.b16 %v1668
    %v1740 = vunpack.c.l.b16 %v1669
    %v1741 = vunpack.c.l.b16 %v1670
    %v1742 = vunpack.c.l.b16 %v1671
    %v1743 = vunpack.c.l.b16 %v1672
    %v1744 = vunpack.c.l.b16 %v1673
    %v1745 = vunpack.c.l.b16 %v1674
    %v1746 = vunpack.c.l.b16 %v1675
    %v1747 = vunpack.c.l.b16 %v1676
    %v1748 = vunpack.c.l.b16 %v1677
    %v1749 = vunpack.c.l.b16 %v1678
    %v1750 = vunpack.c.l.b16 %v1679
    %v1751 = vunpack.c.l.b16 %v1680
    %v1752 = vunpack.c.l.b16 %v1681
    %v1753 = vunpack.c.l.b16 %v1682
    %v1754 = vunpack.c.l.b16 %v1683
    %v1755 = vunpack.c.l.b16 %v1684
    %v1756 = vunpack.c.l.b16 %v1685
    %v1757 = vunpack.c.l.b16 %v1686
    %v1758 = vunpack.c.l.b16 %v1687
    %v1759 = vunpack.c.l.b16 %v1688
    %v1760 = vunpack.c.l.b16 %v1689
    %v1761 = vunpack.c.l.b16 %v1690
    %v1762 = vunpack.c.l.b16 %v1691
    %v1763 = vunpack.c.l.b16 %v1692
    %v1764 = vunpack.c.l.b16 %v1693
    %v1765 = vunpack.c.l.b16 %v1694
    %v1766 = vunpack.c.l.b16 %v1695
    %v1767 = vunpack.c.l.b16 %v1696
    %v1768 = vunpack.c.l.b16 %v1697
    %v1769 = vunpack.c.l.b16 %v1698
    %v1770 = vpack.c.b16 %v1739, %v1738
    %v1771 = vpack.c.b16 %v1741, %v1740
    %v1772 = vpack.c.b16 %v1743, %v1742
    %v1773 = vpack.c.b16 %v1745, %v1744
    %v1774 = vpack.c.b16 %v1747, %v1746
    %v1775 = vpack.c.b16 %v1749, %v1748
    %v1776 = vpack.c.b16 %v1751, %v1750
    %v1777 = vpack.c.b16 %v1753, %v1752
    %v1778 = vpack.c.b16 %v1755, %v1754
    %v1779 = vpack.c.b16 %v1757, %v1756
    %v1780 = vpack.c.b16 %v1759, %v1758
    %v1781 = vpack.c.b16 %v1761, %v1760
    %v1782 = vpack.c.b16 %v1763, %v1762
    %v1783 = vpack.c.b16 %v1765, %v1764
    %v1784 = vpack.c.b16 %v1767, %v1766
    %v1785 = vpack.c.b16 %v1769, %v1768
    %1802 = vmatprep.subr.bf16.mxu0 0
    %1803 = vmatpush1.bf16.msra.mxu0 %v1770
    %1804 = vmatprep.subr.bf16.mxu0 0
    %1805 = vmatpush1.bf16.msra.mxu0 %v1771
    %1806 = vmatprep.subr.bf16.mxu0 0
    %1807 = vmatpush1.bf16.msra.mxu0 %v1772
    %1808 = vmatprep.subr.bf16.mxu0 0
    %1809 = vmatpush1.bf16.msra.mxu0 %v1773
    %1810 = vmatprep.subr.bf16.mxu0 0
    %1811 = vmatpush1.bf16.msra.mxu0 %v1774
    %1812 = vmatprep.subr.bf16.mxu0 0
    %1813 = vmatpush1.bf16.msra.mxu0 %v1775
    %1814 = vmatprep.subr.bf16.mxu0 0
    %1815 = vmatpush1.bf16.msra.mxu0 %v1776
    %1816 = vmatprep.subr.bf16.mxu0 0
    %1817 = vmatpush1.bf16.msra.mxu0 %v1777
    %1818 = vmatprep.subr.bf16.mxu0 0
    %1819 = vmatpush1.bf16.msra.mxu0 %v1778
    %1820 = vmatprep.subr.bf16.mxu0 0
    %1821 = vmatpush1.bf16.msra.mxu0 %v1779
    %1822 = vmatprep.subr.bf16.mxu0 0
    %1823 = vmatpush1.bf16.msra.mxu0 %v1780
    %1824 = vmatprep.subr.bf16.mxu0 0
    %1825 = vmatpush1.bf16.msra.mxu0 %v1781
    %1826 = vmatprep.subr.bf16.mxu0 0
    %1827 = vmatpush1.bf16.msra.mxu0 %v1782
    %1828 = vmatprep.subr.bf16.mxu0 0
    %1829 = vmatpush1.bf16.msra.mxu0 %v1783
    %1830 = vmatprep.subr.bf16.mxu0 0
    %1831 = vmatpush1.bf16.msra.mxu0 %v1784
    %1832 = vmatprep.subr.bf16.mxu0 0
    %1833 = vmatpush1.bf16.msra.mxu0 %v1785
    %1834 = vmatprep.mubr.bf16.mxu0 %v1652
    %1835 = vmatmul.mubr.bf16.gmra.mrb[0].mxu0 %v1651
    %v1836 = vpop.f32.mrb[0].mxu0
    %v1837 = vadd.f32 %v1704, %v1836
    %v1838 = vpop.f32.mrb[0].mxu0
    %v1839 = vpop.f32.mrb[0].mxu0
    %v1840 = vadd.f32 %v1704, %v1839
    %v1841 = vpop.f32.mrb[0].mxu0
    %1842 = vmatprep.mubr.bf16.mxu0 %v1654
    %1843 = vmatmul.mubr.bf16.gmra.mrb[0].mxu0 %v1653
    %v1844 = vpop.f32.mrb[0].mxu0
    %v1845 = vadd.f32 %v1704, %v1844
    %v1846 = vpop.f32.mrb[0].mxu0
    %v1847 = vpop.f32.mrb[0].mxu0
    %v1848 = vadd.f32 %v1704, %v1847
    %v1849 = vpop.f32.mrb[0].mxu0
    %1850 = vmatprep.mubr.bf16.mxu0 %v1656
    %1851 = vmatmul.mubr.bf16.gmra.mrb[0].mxu0 %v1655
    %v1852 = vpop.f32.mrb[0].mxu0
    %v1853 = vadd.f32 %v1704, %v1852
    %v1854 = vpop.f32.mrb[0].mxu0
    %v1855 = vpop.f32.mrb[0].mxu0
    %v1856 = vadd.f32 %v1704, %v1855
    %v1857 = vpop.f32.mrb[0].mxu0
    %1858 = vmatprep.mubr.bf16.mxu0 %v1658
    %1859 = vmatmul.mubr.bf16.gmra.mrb[0].mxu0 %v1657
    %v1860 = vpop.f32.mrb[0].mxu0
    %v1861 = vadd.f32 %v1704, %v1860
    %v1862 = vpop.f32.mrb[0].mxu0
    %v1863 = vpop.f32.mrb[0].mxu0
    %v1864 = vadd.f32 %v1704, %v1863
    %v1865 = vpop.f32.mrb[0].mxu0
    %1866 = vmatprep.mubr.bf16.mxu0 %v1660
    %1867 = vmatmul.mubr.bf16.gmra.mrb[0].mxu0 %v1659
    %v1868 = vpop.f32.mrb[0].mxu0
    %v1869 = vadd.f32 %v1704, %v1868
    %v1870 = vpop.f32.mrb[0].mxu0
    %v1871 = vpop.f32.mrb[0].mxu0
    %v1872 = vadd.f32 %v1704, %v1871
    %v1873 = vpop.f32.mrb[0].mxu0
    %1874 = vmatprep.mubr.bf16.mxu0 %v1662
    %1875 = vmatmul.mubr.bf16.gmra.mrb[0].mxu0 %v1661
    %v1876 = vpop.f32.mrb[0].mxu0
    %v1877 = vadd.f32 %v1704, %v1876
    %v1878 = vpop.f32.mrb[0].mxu0
    %v1879 = vpop.f32.mrb[0].mxu0
    %v1880 = vadd.f32 %v1704, %v1879
    %v1881 = vpop.f32.mrb[0].mxu0
    %1882 = vmatprep.mubr.bf16.mxu0 %v1664
    %1883 = vmatmul.mubr.bf16.gmra.mrb[0].mxu0 %v1663
    %v1884 = vpop.f32.mrb[0].mxu0
    %v1885 = vadd.f32 %v1704, %v1884
    %v1886 = vpop.f32.mrb[0].mxu0
    %v1887 = vpop.f32.mrb[0].mxu0
    %v1888 = vadd.f32 %v1704, %v1887
    %v1889 = vpop.f32.mrb[0].mxu0
    %1890 = vmatprep.mubr.bf16.mxu0 %v1666
    %1891 = vmatmul.mubr.bf16.gmra.mrb[0].mxu0 %v1665
    %v1892 = vpop.f32.mrb[0].mxu0
    %v1893 = vadd.f32 %v1704, %v1892
    %v1894 = vpop.f32.mrb[0].mxu0
    %v1895 = vpop.f32.mrb[0].mxu0
    %v1896 = vadd.f32 %v1704, %v1895
    %v1897 = vpop.f32.mrb[0].mxu0
    %1898 = vdwg.mxu0
    %v1899 = vpack.c.bf16 %v1840, %v1837
    %v1900 = vpack.c.bf16 %v1848, %v1845
    %v1901 = vpack.c.bf16 %v1856, %v1853
    %v1902 = vpack.c.bf16 %v1864, %v1861
    %v1903 = vpack.c.bf16 %v1872, %v1869
    %v1904 = vpack.c.bf16 %v1880, %v1877
    %v1905 = vpack.c.bf16 %v1888, %v1885
    %v1906 = vpack.c.bf16 %v1896, %v1893
    %v1915 = vunpack.c.l.b16 %v1899
    %v1916 = vunpack.c.h.b16 %v1899
    %v1917 = vunpack.c.l.b16 %v1900
    %v1918 = vunpack.c.h.b16 %v1900
    %v1919 = vunpack.c.l.b16 %v1901
    %v1920 = vunpack.c.h.b16 %v1901
    %v1921 = vunpack.c.l.b16 %v1902
    %v1922 = vunpack.c.h.b16 %v1902
    %v1923 = vunpack.c.l.b16 %v1903
    %v1924 = vunpack.c.h.b16 %v1903
    %v1925 = vunpack.c.l.b16 %v1904
    %v1926 = vunpack.c.h.b16 %v1904
    %v1927 = vunpack.c.l.b16 %v1905
    %v1928 = vunpack.c.h.b16 %v1905
    %v1929 = vunpack.c.l.b16 %v1906
    %v1930 = vunpack.c.h.b16 %v1906
    %v1931 = vpack.c.b16 %v1915, %v1915
    %v1932 = vpack.c.b16 %v1916, %v1916
    %v1933 = vpack.c.b16 %v1917, %v1917
    %v1934 = vpack.c.b16 %v1918, %v1918
    %v1935 = vpack.c.b16 %v1919, %v1919
    %v1936 = vpack.c.b16 %v1920, %v1920
    %v1937 = vpack.c.b16 %v1921, %v1921
    %v1938 = vpack.c.b16 %v1922, %v1922
    %v1939 = vpack.c.b16 %v1923, %v1923
    %v1940 = vpack.c.b16 %v1924, %v1924
    %v1941 = vpack.c.b16 %v1925, %v1925
    %v1942 = vpack.c.b16 %v1926, %v1926
    %v1943 = vpack.c.b16 %v1927, %v1927
    %v1944 = vpack.c.b16 %v1928, %v1928
    %v1945 = vpack.c.b16 %v1929, %v1929
    %v1946 = vpack.c.b16 %v1930, %v1930
    %1963 = vst [vmem:[%s9] sm:$0xf] %v1931
    %1964 = vst [vmem:[%s9 + $0x4] sm:$0xf] %v1932
    %1965 = vst [vmem:[%s9 + $0x8] sm:$0xf] %v1933
    %1966 = vst [vmem:[%s9 + $0xc] sm:$0xf] %v1934
    %1967 = vst [vmem:[%s9 + $0x10] sm:$0xf] %v1935
    %1968 = vst [vmem:[%s9 + $0x14] sm:$0xf] %v1936
    %1969 = vst [vmem:[%s9 + $0x18] sm:$0xf] %v1937
    %1970 = vst [vmem:[%s9 + $0x1c] sm:$0xf] %v1938
    %1971 = vst [vmem:[%s9 + $0x20] sm:$0xf] %v1939
    %1972 = vst [vmem:[%s9 + $0x24] sm:$0xf] %v1940
    %1973 = vst [vmem:[%s9 + $0x28] sm:$0xf] %v1941
    %1974 = vst [vmem:[%s9 + $0x2c] sm:$0xf] %v1942
    %1975 = vst [vmem:[%s9 + $0x30] sm:$0xf] %v1943
    %1976 = vst [vmem:[%s9 + $0x34] sm:$0xf] %v1944
    %1977 = vst [vmem:[%s9 + $0x38] sm:$0xf] %v1945
    %1978 = vst [vmem:[%s9 + $0x3c] sm:$0xf] %v1946
    // Predicated region
    $region62: #{pe_grid_forward.1} parent=1 // pred_check
      _
    $region63: #{pe_grid_forward.1} parent=1 // pred_check_branch
      %1980 = sbr.rel (0) target = $region65
    $region64: #{pe_grid_forward.1} parent=1 // pred_region
      _
    $region65: #{pe_grid_forward.1} parent=1 // pred_fallthru
      _
    // Predicated region
    $region66: #{pe_grid_forward.1} parent=1 // pred_check
      _
    $region67: #{pe_grid_forward.1} parent=1 // pred_check_branch
      %1982 = sbr.rel (0) target = $region69
    $region68: #{pe_grid_forward.1} parent=1 // pred_region
      _
    $region69: #{pe_grid_forward.1} parent=1 // pred_fallthru
      _
    %1983 = vsyncpa [#allocation3], 1
    %1984 = vsyncpa [#allocation5], 1
    %1985 = vsyncpa [#allocation8], 1
    %1986 = vsyncpa [#allocation11], 1

</llo_original>
